<compile_context>
chip_gen: v7x
topology: tpu7x:2x2x1
jax: 0.10.0
libtpu: 0.0.40
codegen_flags: <defaults>
</compile_context>

<pallas_src>
from functools import partial

import jax
import jax.numpy as jnp
from jax.experimental import pallas as pl
from jax.experimental.pallas import tpu as pltpu

# Keep f32 matmul precision for reference vs. kernel comparisons.
jax.config.update("jax_default_matmul_precision", "highest")

OUT_SIZE = 7       # Linear(HIDDEN_SIZE, 7)
OUT_PAD = 128      # lane-dense padded output width (wrapper slices back to 7)
SUBLANES = 8       # f32 sublane count; batch is padded to a multiple of this
TIME_CHUNK = 32    # timesteps per grid step in the fused sequence kernel


def _round_up(n, m):
    return ((n + m - 1) // m) * m


# ----------------------------------------------------------------------------
# Kernels
# ----------------------------------------------------------------------------
def _sketch_cell_kernel(x_ref, h0_ref, c0_ref, wih_t_ref, whh_t_ref, b_ref,
                        wlin_t_ref, blin_ref, out_ref):
    """Single-step forward. Gridless: whole (batch-padded) problem in VMEM."""
    H = h0_ref.shape[-1]
    gates = (jnp.dot(x_ref[...], wih_t_ref[...],
                     preferred_element_type=jnp.float32)
             + jnp.dot(h0_ref[...], whh_t_ref[...],
                       preferred_element_type=jnp.float32)
             + b_ref[...])                                   # (Bp, 4H)
    lane = jax.lax.broadcasted_iota(jnp.int32, gates.shape, 1)
    is_g = (lane >= 2 * H) & (lane < 3 * H)
    # g columns were pre-scaled by 2 in prepare_params, so
    # tanh(x_g) == 2*sigmoid(2*x_g) - 1 == 2*sig - 1: one EUP pass total.
    sig = jax.nn.sigmoid(gates)
    act = jnp.where(is_g, 2.0 * sig - 1.0, sig)
    i_g = act[:, 0 * H:1 * H]
    f_g = act[:, 1 * H:2 * H]
    g_g = act[:, 2 * H:3 * H]
    o_g = act[:, 3 * H:4 * H]
    c_new = f_g * c0_ref[...] + i_g * g_g
    h_new = o_g * jnp.tanh(c_new)
    out_ref[...] = jnp.tanh(
        jnp.dot(h_new, wlin_t_ref[...], preferred_element_type=jnp.float32)
        + blin_ref[...]).astype(out_ref.dtype)


def _sketch_cell_seq_kernel(xp_ref, h0_ref, c0_ref, whh_t_ref, wlin_t_ref,
                            blin_ref, out_ref, h_sc, c_sc, hbuf_sc,
                            *, tc, bp, hidden):
    """Time-chunked recurrence.

    One grid step = `tc` timesteps.  h/c are carried across grid steps in VMEM
    scratch; weights stay VMEM-resident (index_map -> (0,0)).  The serial inner
    loop does only the recurrent matmul + gate math; the Linear head and the
    (tc*bp, OUT_PAD) output store happen once per chunk.
    """
    H = hidden

    @pl.when(pl.program_id(0) == 0)
    def _init():
        h_sc[...] = h0_ref[...]
        c_sc[...] = c0_ref[...]

    whh_t = whh_t_ref[...]                                   # (H, 4H), resident
    # Loop-invariant lane mask for the g-gate (tanh) columns (hoisted).
    lane = jax.lax.broadcasted_iota(jnp.int32, (bp, 4 * H), 1)
    is_g = (lane >= 2 * H) & (lane < 3 * H)

    def step(t, carry):
        h, c = carry
        row = pl.multiple_of(t * bp, bp)                     # bp is multiple of 8
        # Input projection + bias were precomputed outside the recurrence;
        # only the recurrent matmul sits on the serial path.
        gates = xp_ref[pl.ds(row, bp), :] + jnp.dot(
            h, whh_t, preferred_element_type=jnp.float32)    # (bp, 4H)
        sig = jax.nn.sigmoid(gates)                          # single EUP pass
        act = jnp.where(is_g, 2.0 * sig - 1.0, sig)          # tanh via sigmoid
        i_g = act[:, 0 * H:1 * H]
        f_g = act[:, 1 * H:2 * H]
        g_g = act[:, 2 * H:3 * H]
        o_g = act[:, 3 * H:4 * H]
        c = f_g * c + i_g * g_g
        h = o_g * jnp.tanh(c)
        hbuf_sc[pl.ds(row, bp), :] = h
        return h, c

    h_f, c_f = jax.lax.fori_loop(0, tc, step, (h_sc[...], c_sc[...]),
                                 unroll=True)
    h_sc[...] = h_f
    c_sc[...] = c_f

    # Chunk-wide Linear head + tanh: one (tc*bp, H) x (H, 128) matmul and one
    # lane- and sublane-dense store per chunk.
    logits = jnp.tanh(
        jnp.dot(hbuf_sc[...], wlin_t_ref[...],
                preferred_element_type=jnp.float32) + blin_ref[...])
    out_ref[...] = logits.astype(out_ref.dtype)


# ----------------------------------------------------------------------------
# Parameter preparation (done ONCE, outside the per-call path)
# ----------------------------------------------------------------------------
def prepare_params(params):
    """Pre-transpose weights, fold the two LSTM biases, pre-scale the g-gate
    columns by 2 (so tanh(x) = 2*sigmoid(2x)-1 needs only one EUP pass), and
    pad the Linear head to a lane-dense (H, 128)/(1, 128) layout."""
    H = params["w_hh"].shape[1]
    g_scale = jnp.ones((4 * H,), jnp.float32).at[2 * H:3 * H].set(2.0)
    w_ih_t = jnp.asarray(params["w_ih"].T, jnp.float32) * g_scale   # (I, 4H)
    w_hh_t = jnp.asarray(params["w_hh"].T, jnp.float32) * g_scale   # (H, 4H)
    b = ((params["b_ih"] + params["b_hh"]).astype(jnp.float32)
         * g_scale).reshape(1, 4 * H)                               # (1, 4H)
    w_lin_t = jnp.zeros((H, OUT_PAD), jnp.float32).at[:, :OUT_SIZE].set(
        params["w_lin"].T.astype(jnp.float32))                      # (H, 128)
    b_lin = jnp.zeros((1, OUT_PAD), jnp.float32).at[:, :OUT_SIZE].set(
        params["b_lin"].astype(jnp.float32))                        # (1, 128)
    return {"w_ih_t": w_ih_t, "w_hh_t": w_hh_t, "b": b,
            "w_lin_t": w_lin_t, "b_lin": b_lin, "hidden": H}


# ----------------------------------------------------------------------------
# pallas_call wrappers
# ----------------------------------------------------------------------------
@jax.jit
def _single_step_call(x, h0, c0, w_ih_t, w_hh_t, b, w_lin_t, b_lin):
    B, I = x.shape
    H = h0.shape[-1]
    Bp = _round_up(B, SUBLANES)
    # Zero-pad the batch to a multiple of 8 sublanes (padded rows are
    # independent and sliced away below).
    x_p = jnp.zeros((Bp, I), jnp.float32).at[:B].set(x)
    h_p = jnp.zeros((Bp, H), jnp.float32).at[:B].set(h0)
    c_p = jnp.zeros((Bp, H), jnp.float32).at[:B].set(c0)
    operands = (x_p, h_p, c_p, w_ih_t, w_hh_t, b, w_lin_t, b_lin)
    out = pl.pallas_call(
        _sketch_cell_kernel,
        out_shape=jax.ShapeDtypeStruct((Bp, OUT_PAD), jnp.float32),
        in_specs=[pl.BlockSpec(memory_space=pltpu.MemorySpace.VMEM)
                  for _ in operands],
        out_specs=pl.BlockSpec(memory_space=pltpu.MemorySpace.VMEM),
    )(*operands)
    return out[:B, :OUT_SIZE]


@jax.jit
def _sequence_call(x_seq, h0, c0, w_ih_t, w_hh_t, b, w_lin_t, b_lin):
    T, B, I = x_seq.shape
    H = h0.shape[-1]
    G = 4 * H
    Bp = _round_up(B, SUBLANES)
    TC = min(TIME_CHUNK, T)
    Tp = _round_up(T, TC)

    # Zero-pad batch (independent rows) and time (trailing steps, discarded).
    x_p = jnp.zeros((Tp, Bp, I), jnp.float32).at[:T, :B].set(x_seq)
    h0_p = jnp.zeros((Bp, H), jnp.float32).at[:B].set(h0)
    c0_p = jnp.zeros((Bp, H), jnp.float32).at[:B].set(c0)

    # Hoisted, non-recurrent input projection + bias fold: one well-shaped
    # (Tp*Bp, I) x (I, 4H) matmul outside the serial recurrence.
    x_proj = (jnp.dot(x_p.reshape(Tp * Bp, I), w_ih_t,
                      preferred_element_type=jnp.float32) + b)   # (Tp*Bp, 4H)

    kernel = partial(_sketch_cell_seq_kernel, tc=TC, bp=Bp, hidden=H)
    grid_spec = pltpu.PrefetchScalarGridSpec(
        num_scalar_prefetch=0,
        grid=(Tp // TC,),
        in_specs=[
            # per-chunk slab of the precomputed input projection
            pl.BlockSpec((TC * Bp, G), lambda c: (c, 0)),
            # initial state: same block every chunk (only read at chunk == 0)
            pl.BlockSpec((Bp, H), lambda c: (0, 0)),
            pl.BlockSpec((Bp, H), lambda c: (0, 0)),
            # weights: same block every chunk -> VMEM-resident across the grid
            pl.BlockSpec((H, G), lambda c: (0, 0)),
            pl.BlockSpec((H, OUT_PAD), lambda c: (0, 0)),
            pl.BlockSpec((1, OUT_PAD), lambda c: (0, 0)),
        ],
        out_specs=pl.BlockSpec((TC * Bp, OUT_PAD), lambda c: (c, 0)),
        scratch_shapes=[pltpu.VMEM((Bp, H), jnp.float32),        # h carry
                        pltpu.VMEM((Bp, H), jnp.float32),        # c carry
                        pltpu.VMEM((TC * Bp, H), jnp.float32)],  # chunk h stage
    )
    out = pl.pallas_call(
        kernel,
        out_shape=jax.ShapeDtypeStruct((Tp * Bp, OUT_PAD), jnp.float32),
        grid_spec=grid_spec,
        compiler_params=pltpu.CompilerParams(
            dimension_semantics=("arbitrary",)),   # recurrent time-chunk axis
        # TODO(synk): with >=2 independent sequence groups, add a leading
        # "parallel" grid axis over groups to use both TensorCores on v7x.
    )(x_proj, h0_p, c0_p, w_hh_t, w_lin_t, b_lin)
    out = out.reshape(Tp, Bp, OUT_PAD)
    return out[:T, :B, :OUT_SIZE]


# ----------------------------------------------------------------------------
# Public API (mirrors the PyTorch module)
# ----------------------------------------------------------------------------
def sketch_cell_forward(x, prepared, hidden_state=None):
    """Mirrors SketchCell.forward: returns (logits, hidden_state)."""
    B = x.shape[0]
    H = prepared["hidden"]
    if hidden_state is None:
        h0 = jnp.zeros((B, H), jnp.float32)
        c0 = jnp.zeros((B, H), jnp.float32)
    else:
        h0, c0 = hidden_state
    logits = _single_step_call(x, h0, c0,
                               prepared["w_ih_t"], prepared["w_hh_t"],
                               prepared["b"], prepared["w_lin_t"],
                               prepared["b_lin"])
    # Faithful to the PyTorch module: it returns the *input* hidden_state.
    return logits, hidden_state


def sketch_cell_sequence(x_seq, prepared, hidden_state=None):
    """Fused, time-chunked T-step version (one pallas_call for the whole
    sequence).  Equivalent to running the cell recurrently over x_seq[t]."""
    _, B, _ = x_seq.shape
    H = prepared["hidden"]
    if hidden_state is None:
        h0 = jnp.zeros((B, H), jnp.float32)
        c0 = jnp.zeros((B, H), jnp.float32)
    else:
        h0, c0 = hidden_state
    return _sequence_call(x_seq, h0, c0,
                          prepared["w_ih_t"], prepared["w_hh_t"],
                          prepared["b"], prepared["w_lin_t"],
                          prepared["b_lin"])


# ----------------------------------------------------------------------------
# Init + pure-JAX references
# ----------------------------------------------------------------------------
def init_params(key, input_size, hidden_size, out_size=OUT_SIZE):
    """Deterministic init matching PyTorch default U(-1/sqrt(H), 1/sqrt(H))."""
    ks = jax.random.split(key, 6)
    bound = 1.0 / jnp.sqrt(hidden_size)
    u = lambda k, shape, b: jax.random.uniform(k, shape, jnp.float32, -b, b)
    return {
        "w_ih": u(ks[0], (4 * hidden_size, input_size), bound),
        "w_hh": u(ks[1], (4 * hidden_size, hidden_size), bound),
        "b_ih": u(ks[2], (4 * hidden_size,), bound),
        "b_hh": u(ks[3], (4 * hidden_size,), bound),
        "w_lin": u(ks[4], (out_size, hidden_size), bound),
        "b_lin": u(ks[5], (out_size,), bound),
    }


def _reference_step(x, params, h, c):
    gates = (x @ params["w_ih"].T + params["b_ih"]
             + h @ params["w_hh"].T + params["b_hh"])
    i, f, g, o = jnp.split(gates, 4, axis=-1)
    i, f, o = jax.nn.sigmoid(i), jax.nn.sigmoid(f), jax.nn.sigmoid(o)
    g = jnp.tanh(g)
    c_new = f * c + i * g
    h_new = o * jnp.tanh(c_new)
    logits = jnp.tanh(h_new @ params["w_lin"].T + params["b_lin"])
    return logits, h_new, c_new


def _reference_forward(x, params, hidden_state=None):
    B = x.shape[0]
    H = params["w_hh"].shape[1]
    if hidden_state is None:
        h = jnp.zeros((B, H), jnp.float32)
        c = jnp.zeros((B, H), jnp.float32)
    else:
        h, c = hidden_state
    logits, _, _ = _reference_step(x, params, h, c)
    return logits


def _reference_sequence(x_seq, params, hidden_state=None):
    B = x_seq.shape[1]
    H = params["w_hh"].shape[1]
    if hidden_state is None:
        h = jnp.zeros((B, H), jnp.float32)
        c = jnp.zeros((B, H), jnp.float32)
    else:
        h, c = hidden_state

    def step(carry, x_t):
        h, c = carry
        logits, h, c = _reference_step(x_t, params, h, c)
        return (h, c), logits

    _, out = jax.lax.scan(step, (h, c), x_seq)
    return out


# ----------------------------------------------------------------------------
if __name__ == "__main__":
    BATCH, INPUT_SIZE, HIDDEN_SIZE, SEQ = 2, 8, 32, 8

    key = jax.random.PRNGKey(0)
    k_params, k_x, k_h, k_c, k_seq = jax.random.split(key, 5)
    params = init_params(k_params, INPUT_SIZE, HIDDEN_SIZE)
    prepared = prepare_params(params)           # one-time weight prep

    x = jax.random.normal(k_x, (BATCH, INPUT_SIZE), jnp.float32)
    h0 = jax.random.normal(k_h, (BATCH, HIDDEN_SIZE), jnp.float32)
    c0 = jax.random.normal(k_c, (BATCH, HIDDEN_SIZE), jnp.float32)
    x_seq = jax.random.normal(k_seq, (SEQ, BATCH, INPUT_SIZE), jnp.float32)

    # --- single-step (faithful SketchCell.forward) ---------------------------
    logits_none, hs_none = sketch_cell_forward(x, prepared, hidden_state=None)
    logits_none = jax.block_until_ready(logits_none)
    logits_hs, hs_out = sketch_cell_forward(x, prepared, hidden_state=(h0, c0))
    logits_hs = jax.block_until_ready(logits_hs)

    ref_none = _reference_forward(x, params, None)
    ref_hs = _reference_forward(x, params, (h0, c0))
    assert logits_none.shape == (BATCH, OUT_SIZE)
    assert jnp.allclose(logits_none, ref_none, atol=1e-4, rtol=1e-4)
    assert jnp.allclose(logits_hs, ref_hs, atol=1e-4, rtol=1e-4)
    assert hs_none is None
    assert hs_out[0] is h0 and hs_out[1] is c0   # module returns input state

    # --- fused multi-step recurrence (one pallas_call for SEQ steps) ---------
    seq_out = jax.block_until_ready(
        sketch_cell_sequence(x_seq, prepared, hidden_state=(h0, c0)))
    seq_ref = _reference_sequence(x_seq, params, (h0, c0))
    assert seq_out.shape == (SEQ, BATCH, OUT_SIZE)
    assert jnp.allclose(seq_out, seq_ref, atol=1e-4, rtol=1e-4)

    seq_out0 = jax.block_until_ready(
        sketch_cell_sequence(x_seq, prepared, hidden_state=None))
    seq_ref0 = _reference_sequence(x_seq, params, None)
    assert jnp.allclose(seq_out0, seq_ref0, atol=1e-4, rtol=1e-4)

    print("KERNEL_OK")
</pallas_src>

<mosaic_0001>
module attributes {stable_mosaic.version = 11 : i64} {
  func.func @_sketch_cell_kernel(%arg0: memref<8x8xf32, #tpu.memory_space<vmem>>, %arg1: memref<8x32xf32, #tpu.memory_space<vmem>>, %arg2: memref<8x32xf32, #tpu.memory_space<vmem>>, %arg3: memref<8x128xf32, #tpu.memory_space<vmem>>, %arg4: memref<32x128xf32, #tpu.memory_space<vmem>>, %arg5: memref<1x128xf32, #tpu.memory_space<vmem>>, %arg6: memref<32x128xf32, #tpu.memory_space<vmem>>, %arg7: memref<1x128xf32, #tpu.memory_space<vmem>>, %arg8: memref<8x128xf32, #tpu.memory_space<vmem>>) attributes {dimension_semantics = [], scalar_prefetch = 0 : i64, scratch_operands = 0 : i64, tpu.core_type = #tpu.core_type<tc>} {
    %c0 = arith.constant 0 : index
    %c0_0 = arith.constant 0 : index
    %0 = vector.load %arg0[%c0, %c0_0] : memref<8x8xf32, #tpu.memory_space<vmem>>, vector<8x8xf32>
    %c0_1 = arith.constant 0 : index
    %c0_2 = arith.constant 0 : index
    %1 = vector.load %arg3[%c0_1, %c0_2] : memref<8x128xf32, #tpu.memory_space<vmem>>, vector<8x128xf32>
    %cst = arith.constant dense<0.000000e+00> : vector<8x128xf32>
    %2 = tpu.matmul %0, %1, %cst {dimension_numbers = #tpu.dot_dimension_numbers<[1], [0], [0], [1], [0, 0, 1, 1], [], []>, precision = #tpu.contract_precision<fp32>} : vector<8x8xf32>, vector<8x128xf32>, vector<8x128xf32> -> vector<8x128xf32>
    %c0_3 = arith.constant 0 : index
    %c0_4 = arith.constant 0 : index
    %3 = vector.load %arg1[%c0_3, %c0_4] : memref<8x32xf32, #tpu.memory_space<vmem>>, vector<8x32xf32>
    %c0_5 = arith.constant 0 : index
    %c0_6 = arith.constant 0 : index
    %4 = vector.load %arg4[%c0_5, %c0_6] : memref<32x128xf32, #tpu.memory_space<vmem>>, vector<32x128xf32>
    %cst_7 = arith.constant dense<0.000000e+00> : vector<8x128xf32>
    %5 = tpu.matmul %3, %4, %cst_7 {dimension_numbers = #tpu.dot_dimension_numbers<[1], [0], [0], [1], [0, 0, 1, 1], [], []>, precision = #tpu.contract_precision<fp32>} : vector<8x32xf32>, vector<32x128xf32>, vector<8x128xf32> -> vector<8x128xf32>
    %6 = arith.addf %2, %5 : vector<8x128xf32>
    %c0_8 = arith.constant 0 : index
    %c0_9 = arith.constant 0 : index
    %7 = vector.load %arg5[%c0_8, %c0_9] : memref<1x128xf32, #tpu.memory_space<vmem>>, vector<1x128xf32>
    %8 = vector.broadcast %7 : vector<1x128xf32> to vector<8x128xf32>
    %9 = arith.addf %6, %8 : vector<8x128xf32>
    %10 = tpu.iota {dimensions = array<i32: 1>} : vector<8x128xi32>
    %c64_i32 = arith.constant 64 : i32
    %11 = vector.broadcast %c64_i32 : i32 to vector<8x128xi32>
    %12 = arith.cmpi sge, %10, %11 : vector<8x128xi32>
    %c96_i32 = arith.constant 96 : i32
    %13 = vector.broadcast %c96_i32 : i32 to vector<8x128xi32>
    %14 = arith.cmpi slt, %10, %13 : vector<8x128xi32>
    %15 = arith.andi %12, %14 : vector<8x128xi1>
    %16 = arith.negf %9 : vector<8x128xf32>
    %17 = math.exp %16 : vector<8x128xf32>
    %cst_10 = arith.constant 1.000000e+00 : f32
    %18 = vector.broadcast %cst_10 : f32 to vector<8x128xf32>
    %19 = arith.addf %18, %17 : vector<8x128xf32>
    %20 = arith.divf %18, %19 : vector<8x128xf32>
    %cst_11 = arith.constant 2.000000e+00 : f32
    %21 = vector.broadcast %cst_11 : f32 to vector<8x128xf32>
    %22 = arith.mulf %21, %20 : vector<8x128xf32>
    %cst_12 = arith.constant 1.000000e+00 : f32
    %23 = vector.broadcast %cst_12 : f32 to vector<8x128xf32>
    %24 = arith.subf %22, %23 : vector<8x128xf32>
    %25 = arith.select %15, %24, %20 : vector<8x128xi1>, vector<8x128xf32>
    %26 = vector.extract_strided_slice %25 {offsets = [0, 0], sizes = [8, 32], strides = [1, 1]} : vector<8x128xf32> to vector<8x32xf32>
    %27 = vector.extract_strided_slice %25 {offsets = [0, 32], sizes = [8, 32], strides = [1, 1]} : vector<8x128xf32> to vector<8x32xf32>
    %28 = vector.extract_strided_slice %25 {offsets = [0, 64], sizes = [8, 32], strides = [1, 1]} : vector<8x128xf32> to vector<8x32xf32>
    %29 = vector.extract_strided_slice %25 {offsets = [0, 96], sizes = [8, 32], strides = [1, 1]} : vector<8x128xf32> to vector<8x32xf32>
    %c0_13 = arith.constant 0 : index
    %c0_14 = arith.constant 0 : index
    %30 = vector.load %arg2[%c0_13, %c0_14] : memref<8x32xf32, #tpu.memory_space<vmem>>, vector<8x32xf32>
    %31 = arith.mulf %27, %30 : vector<8x32xf32>
    %32 = arith.mulf %26, %28 : vector<8x32xf32>
    %33 = arith.addf %31, %32 : vector<8x32xf32>
    %34 = math.tanh %33 : vector<8x32xf32>
    %35 = arith.mulf %29, %34 : vector<8x32xf32>
    %c0_15 = arith.constant 0 : index
    %c0_16 = arith.constant 0 : index
    %36 = vector.load %arg6[%c0_15, %c0_16] : memref<32x128xf32, #tpu.memory_space<vmem>>, vector<32x128xf32>
    %cst_17 = arith.constant dense<0.000000e+00> : vector<8x128xf32>
    %37 = tpu.matmul %35, %36, %cst_17 {dimension_numbers = #tpu.dot_dimension_numbers<[1], [0], [0], [1], [0, 0, 1, 1], [], []>, precision = #tpu.contract_precision<fp32>} : vector<8x32xf32>, vector<32x128xf32>, vector<8x128xf32> -> vector<8x128xf32>
    %c0_18 = arith.constant 0 : index
    %c0_19 = arith.constant 0 : index
    %38 = vector.load %arg7[%c0_18, %c0_19] : memref<1x128xf32, #tpu.memory_space<vmem>>, vector<1x128xf32>
    %39 = vector.broadcast %38 : vector<1x128xf32> to vector<8x128xf32>
    %40 = arith.addf %37, %39 : vector<8x128xf32>
    %41 = math.tanh %40 : vector<8x128xf32>
    %c0_20 = arith.constant 0 : index
    %c0_21 = arith.constant 0 : index
    %42 = vector.load %arg8[%c0_20, %c0_21] : memref<8x128xf32, #tpu.memory_space<vmem>>, vector<8x128xf32>
    tpu.vector_store %arg8[%c0_20, %c0_21], %41 {strides = array<i32>} : memref<8x128xf32, #tpu.memory_space<vmem>>, vector<8x128xf32>,
    return
  }
}

</mosaic_0001>

<llo_original>
// kernel: _single_step_call.1
$region0: #{_single_step_call.1}
  #allocation0 [shape = 'u32[]', space=smem, size = 0x4, offset = 0x4, fixed_abs, tag = 'smem constant byte address 0x4 - core index']
  #allocation1 [shape = 'u32[144,128]{1,0:T(1,128)}', space=vmem, size = 0x12000, scoped, tag = 'internal scratch']
  %s0 = inlined_call_operand.vmem [shape: f32[8,8], index: 0, kind: input, shape index: {}]
  %s1 = inlined_call_operand.vmem [shape: f32[8,32], index: 1, kind: input, shape index: {}]
  %s2 = inlined_call_operand.vmem [shape: f32[8,32], index: 2, kind: input, shape index: {}]
  %s3 = inlined_call_operand.vmem [shape: f32[8,128], index: 3, kind: input, shape index: {}]
  %s4 = inlined_call_operand.vmem [shape: f32[32,128], index: 4, kind: input, shape index: {}]
  %s5 = inlined_call_operand.vmem [shape: f32[1,128], index: 5, kind: input, shape index: {}]
  %s6 = inlined_call_operand.hbm [shape: f32[32,128], index: 6, kind: input, shape index: {}]
  %s7 = inlined_call_operand.vmem [shape: f32[1,128], index: 7, kind: input, shape index: {}]
  %s8 = inlined_call_operand.vmem [shape: f32[8,128], index: 8, kind: output, shape index: {}]
  %s9 = sld [smem:[#allocation0]]
  $region46: #{_single_step_call.1} parent=0
    _
  %s11 = ssub.s32 1, %s9
  %s12 = scalar_select 0, %s11, %s9
  $region1: #{_single_step_call.1} parent=0
    #allocation2 [shape = 'u8[16384]{0}', space=vmem, size = 0x4000, scoped, tag = 'input window, operand 6, single buffered']
    #allocation3 [shape = 's32[1]{0}', space=sflag, size = 0x4, scoped, tag = 'scoped memory for _single_step_call.1']
    %13 = vsyncpa [#allocation3], 0
    // Predicated region
    $region2: #{_single_step_call.1} parent=1 // pred_check
      _
    $region3: #{_single_step_call.1} parent=1 // pred_check_branch
      %15 = sbr.rel (0) target = $region5
    $region4: #{_single_step_call.1} parent=1 // pred_region
      _
    $region5: #{_single_step_call.1} parent=1 // pred_fallthru
      _
    // Predicated region
    $region6: #{_single_step_call.1} parent=1 // pred_check
      _
    $region7: #{_single_step_call.1} parent=1 // pred_check_branch
      %17 = sbr.rel (0) target = $region9
    $region8: #{_single_step_call.1} parent=1 // pred_region
      _
    $region9: #{_single_step_call.1} parent=1 // pred_fallthru
      _
    // Predicated region
    $region10: #{_single_step_call.1} parent=1 // pred_check
      _
    $region11: #{_single_step_call.1} parent=1 // pred_check_branch
      %19 = sbr.rel (0) target = $region13
    $region12: #{_single_step_call.1} parent=1 // pred_region
      _
    $region13: #{_single_step_call.1} parent=1 // pred_fallthru
      _
    // Predicated region
    $region14: #{_single_step_call.1} parent=1 // pred_check
      _
    $region15: #{_single_step_call.1} parent=1 // pred_check_branch
      %21 = sbr.rel (0) target = $region17
    $region16: #{_single_step_call.1} parent=1 // pred_region
      _
    $region17: #{_single_step_call.1} parent=1 // pred_fallthru
      _
    // Predicated region
    $region18: #{_single_step_call.1} parent=1 // pred_check
      _
    $region19: #{_single_step_call.1} parent=1 // pred_check_branch
      %23 = sbr.rel (0) target = $region21
    $region20: #{_single_step_call.1} parent=1 // pred_region
      _
    $region21: #{_single_step_call.1} parent=1 // pred_fallthru
      _
    // Predicated region
    $region22: #{_single_step_call.1} parent=1 // pred_check
      _
    $region23: #{_single_step_call.1} parent=1 // pred_check_branch
      %25 = sbr.rel (0) target = $region25
    $region24: #{_single_step_call.1} parent=1 // pred_region
      _
    $region25: #{_single_step_call.1} parent=1 // pred_fallthru
      _
    // Predicated region
    $region26: #{_single_step_call.1} parent=1 // pred_check
      _
    $region27: #{_single_step_call.1} parent=1 // pred_check_branch
      %27 = sbr.rel (0) target = $region29
    $region28: #{_single_step_call.1} parent=1 // pred_region
      %s29 = ssub.s32 512, 512
      %30 = vsyncadd [#allocation3], %s29
      %s31 = sshll.u32 [#allocation2], 4
      %s32 = int_to_ptr.vmem [resolvable:$true] %s31
      %37 = dma.hbm_to_vmem [thread:$0]  %s6, 512, %s32, [#allocation3], 128, 128, 8
    $region29: #{_single_step_call.1} parent=1 // pred_fallthru
      _
    // Predicated region
    $region30: #{_single_step_call.1} parent=1 // pred_check
      _
    $region31: #{_single_step_call.1} parent=1 // pred_check_branch
      %39 = sbr.rel (0) target = $region33
    $region32: #{_single_step_call.1} parent=1 // pred_region
      _
    $region33: #{_single_step_call.1} parent=1 // pred_fallthru
      _
    // Predicated region
    $region34: #{_single_step_call.1} parent=1 // pred_check
      _
    $region35: #{_single_step_call.1} parent=1 // pred_check_branch
      %41 = sbr.rel (0) target = $region37
    $region36: #{_single_step_call.1} parent=1 // pred_region
      %42 = dma.done [#allocation3], 512
    $region37: #{_single_step_call.1} parent=1 // pred_fallthru
      _
    %v43 = vld [vmem:[%s0] sm:$0xff]
    %v44 = vld [vmem:[%s3] sm:$0xff]
    %v45 = vld [vmem:[%s1] sm:$0xff]
    %v46 = vld [vmem:[%s4] sm:$0xff]
    %v47 = vld [vmem:[%s4 + $0x8] sm:$0xff]
    %v48 = vld [vmem:[%s4 + $0x10] sm:$0xff]
    %v49 = vld [vmem:[%s4 + $0x18] sm:$0xff]
    %vm50 = vcmask 261120
    %v52 = vsel %vm50, %v45, 0
    %54 = vmatprep.subr.mxu0 0.0
    %v55 = vand.u32 %v46, 4294901760
    %56 = vmatpush1.msra.mxu0 %v55
    %57 = vmatprep.subr.mxu0 0.0
    %v58 = vand.u32 %v47, 4294901760
    %59 = vmatpush1.msra.mxu0 %v58
    %60 = vmatprep.subr.mxu0 0.0
    %v61 = vand.u32 %v48, 4294901760
    %62 = vmatpush1.msra.mxu0 %v61
    %63 = vmatprep.subr.mxu0 0.0
    %v64 = vand.u32 %v49, 4294901760
    %65 = vmatpush1.msra.mxu0 %v64
    %66 = vmatprep.subr.mxu0 0.0
    %67 = vmatpush1.msra.mxu0 0.0
    %68 = vmatprep.subr.mxu0 0.0
    %69 = vmatpush1.msra.mxu0 0.0
    %70 = vmatprep.subr.mxu0 0.0
    %71 = vmatpush1.msra.mxu0 0.0
    %72 = vmatprep.subr.mxu0 0.0
    %73 = vmatpush1.msra.mxu0 0.0
    %74 = vmatprep.subr.mxu0 0.0
    %75 = vmatpush1.msra.mxu0 0.0
    %76 = vmatprep.subr.mxu0 0.0
    %77 = vmatpush1.msra.mxu0 0.0
    %78 = vmatprep.subr.mxu0 0.0
    %79 = vmatpush1.msra.mxu0 0.0
    %80 = vmatprep.subr.mxu0 0.0
    %81 = vmatpush1.msra.mxu0 0.0
    %82 = vmatprep.subr.mxu0 0.0
    %83 = vmatpush1.msra.mxu0 0.0
    %84 = vmatprep.subr.mxu0 0.0
    %85 = vmatpush1.msra.mxu0 0.0
    %86 = vmatprep.subr.mxu0 0.0
    %87 = vmatpush1.msra.mxu0 0.0
    %88 = vmatprep.subr.mxu0 0.0
    %89 = vmatpush1.msra.mxu0 0.0
    %90 = vmatprep.subr.mxu0 0.0
    %91 = vmatpush1.msra.mxu0 0.0
    %92 = vmatprep.subr.mxu0 0.0
    %93 = vmatpush1.msra.mxu0 0.0
    %94 = vmatprep.subr.mxu0 0.0
    %95 = vmatpush1.msra.mxu0 0.0
    %96 = vmatprep.subr.mxu0 0.0
    %97 = vmatpush1.msra.mxu0 0.0
    %98 = vmatprep.subr.mxu0 0.0
    %99 = vmatpush1.msra.mxu0 0.0
    %100 = vmatprep.subr.mxu0 0.0
    %101 = vmatpush1.msra.mxu0 0.0
    %102 = vmatprep.subr.mxu0 0.0
    %103 = vmatpush1.msra.mxu0 0.0
    %104 = vmatprep.subr.mxu0 0.0
    %105 = vmatpush1.msra.mxu0 0.0
    %106 = vmatprep.subr.mxu0 0.0
    %107 = vmatpush1.msra.mxu0 0.0
    %108 = vmatprep.subr.mxu0 0.0
    %109 = vmatpush1.msra.mxu0 0.0
    %110 = vmatprep.subr.mxu0 0.0
    %111 = vmatpush1.msra.mxu0 0.0
    %112 = vmatprep.subr.mxu0 0.0
    %113 = vmatpush1.msra.mxu0 0.0
    %114 = vmatprep.subr.mxu0 0.0
    %115 = vmatpush1.msra.mxu0 0.0
    %116 = vmatprep.subr.mxu0 0.0
    %117 = vmatpush1.msra.mxu0 0.0
    %118 = vmatprep.subr.mxu0 0.0
    %119 = vmatpush1.msra.mxu0 0.0
    %120 = vmatprep.subr.mxu0 0.0
    %121 = vmatpush1.msra.mxu0 0.0
    %122 = vmatprep.mubr.f32.mxu0 0.0
    %v123 = vand.u32 %v52, 4294901760
    %v124 = vsub.f32 %v52, %v123
    %v125 = vand.u32 %v124, 4294901760
    %v126 = vsub.f32 %v124, %v125
    %v127 = vand.u32 %v126, 4294901760
    %128 = vmatmul.mubr.f32.gmra.mrb[0].mxu0 %v127
    %v129 = vpop.f32.mrb[0].mxu0
    %v130 = vadd.f32 0.0, %v129
    %v131 = vpop.f32.mrb[0].mxu0
    %132 = vdwg.mxu0
    %133 = vmatprep.subr.mxu0 0.0
    %v134 = vand.u32 %v46, 4294901760
    %v135 = vsub.f32 %v46, %v134
    %v136 = vand.u32 %v135, 4294901760
    %v137 = vsub.f32 %v135, %v136
    %v138 = vand.u32 %v137, 4294901760
    %139 = vmatpush1.msra.mxu0 %v138
    %140 = vmatprep.subr.mxu0 0.0
    %v141 = vand.u32 %v47, 4294901760
    %v142 = vsub.f32 %v47, %v141
    %v143 = vand.u32 %v142, 4294901760
    %v144 = vsub.f32 %v142, %v143
    %v145 = vand.u32 %v144, 4294901760
    %146 = vmatpush1.msra.mxu0 %v145
    %147 = vmatprep.subr.mxu0 0.0
    %v148 = vand.u32 %v48, 4294901760
    %v149 = vsub.f32 %v48, %v148
    %v150 = vand.u32 %v149, 4294901760
    %v151 = vsub.f32 %v149, %v150
    %v152 = vand.u32 %v151, 4294901760
    %153 = vmatpush1.msra.mxu0 %v152
    %154 = vmatprep.subr.mxu0 0.0
    %v155 = vand.u32 %v49, 4294901760
    %v156 = vsub.f32 %v49, %v155
    %v157 = vand.u32 %v156, 4294901760
    %v158 = vsub.f32 %v156, %v157
    %v159 = vand.u32 %v158, 4294901760
    %160 = vmatpush1.msra.mxu0 %v159
    %161 = vmatprep.subr.mxu0 0.0
    %162 = vmatpush1.msra.mxu0 0.0
    %163 = vmatprep.subr.mxu0 0.0
    %164 = vmatpush1.msra.mxu0 0.0
    %165 = vmatprep.subr.mxu0 0.0
    %166 = vmatpush1.msra.mxu0 0.0
    %167 = vmatprep.subr.mxu0 0.0
    %168 = vmatpush1.msra.mxu0 0.0
    %169 = vmatprep.subr.mxu0 0.0
    %170 = vmatpush1.msra.mxu0 0.0
    %171 = vmatprep.subr.mxu0 0.0
    %172 = vmatpush1.msra.mxu0 0.0
    %173 = vmatprep.subr.mxu0 0.0
    %174 = vmatpush1.msra.mxu0 0.0
    %175 = vmatprep.subr.mxu0 0.0
    %176 = vmatpush1.msra.mxu0 0.0
    %177 = vmatprep.subr.mxu0 0.0
    %178 = vmatpush1.msra.mxu0 0.0
    %179 = vmatprep.subr.mxu0 0.0
    %180 = vmatpush1.msra.mxu0 0.0
    %181 = vmatprep.subr.mxu0 0.0
    %182 = vmatpush1.msra.mxu0 0.0
    %183 = vmatprep.subr.mxu0 0.0
    %184 = vmatpush1.msra.mxu0 0.0
    %185 = vmatprep.subr.mxu0 0.0
    %186 = vmatpush1.msra.mxu0 0.0
    %187 = vmatprep.subr.mxu0 0.0
    %188 = vmatpush1.msra.mxu0 0.0
    %189 = vmatprep.subr.mxu0 0.0
    %190 = vmatpush1.msra.mxu0 0.0
    %191 = vmatprep.subr.mxu0 0.0
    %192 = vmatpush1.msra.mxu0 0.0
    %193 = vmatprep.subr.mxu0 0.0
    %194 = vmatpush1.msra.mxu0 0.0
    %195 = vmatprep.subr.mxu0 0.0
    %196 = vmatpush1.msra.mxu0 0.0
    %197 = vmatprep.subr.mxu0 0.0
    %198 = vmatpush1.msra.mxu0 0.0
    %199 = vmatprep.subr.mxu0 0.0
    %200 = vmatpush1.msra.mxu0 0.0
    %201 = vmatprep.subr.mxu0 0.0
    %202 = vmatpush1.msra.mxu0 0.0
    %203 = vmatprep.subr.mxu0 0.0
    %204 = vmatpush1.msra.mxu0 0.0
    %205 = vmatprep.subr.mxu0 0.0
    %206 = vmatpush1.msra.mxu0 0.0
    %207 = vmatprep.subr.mxu0 0.0
    %208 = vmatpush1.msra.mxu0 0.0
    %209 = vmatprep.subr.mxu0 0.0
    %210 = vmatpush1.msra.mxu0 0.0
    %211 = vmatprep.subr.mxu0 0.0
    %212 = vmatpush1.msra.mxu0 0.0
    %213 = vmatprep.subr.mxu0 0.0
    %214 = vmatpush1.msra.mxu0 0.0
    %215 = vmatprep.subr.mxu0 0.0
    %216 = vmatpush1.msra.mxu0 0.0
    %217 = vmatprep.mubr.f32.mxu0 0.0
    %v218 = vand.u32 %v52, 4294901760
    %219 = vmatmul.mubr.f32.gmra.mrb[0].mxu0 %v218
    %v220 = vpop.f32.mrb[0].mxu0
    %v221 = vadd.f32 %v130, %v220
    %v222 = vpop.f32.mrb[0].mxu0
    %223 = vdwg.mxu0
    %224 = vmatprep.subr.mxu0 0.0
    %v225 = vand.u32 %v46, 4294901760
    %v226 = vsub.f32 %v46, %v225
    %227 = vmatpush1.msra.mxu0 %v226
    %228 = vmatprep.subr.mxu0 0.0
    %v229 = vand.u32 %v47, 4294901760
    %v230 = vsub.f32 %v47, %v229
    %231 = vmatpush1.msra.mxu0 %v230
    %232 = vmatprep.subr.mxu0 0.0
    %v233 = vand.u32 %v48, 4294901760
    %v234 = vsub.f32 %v48, %v233
    %235 = vmatpush1.msra.mxu0 %v234
    %236 = vmatprep.subr.mxu0 0.0
    %v237 = vand.u32 %v49, 4294901760
    %v238 = vsub.f32 %v49, %v237
    %239 = vmatpush1.msra.mxu0 %v238
    %240 = vmatprep.subr.mxu0 0.0
    %241 = vmatpush1.msra.mxu0 0.0
    %242 = vmatprep.subr.mxu0 0.0
    %243 = vmatpush1.msra.mxu0 0.0
    %244 = vmatprep.subr.mxu0 0.0
    %245 = vmatpush1.msra.mxu0 0.0
    %246 = vmatprep.subr.mxu0 0.0
    %247 = vmatpush1.msra.mxu0 0.0
    %248 = vmatprep.subr.mxu0 0.0
    %249 = vmatpush1.msra.mxu0 0.0
    %250 = vmatprep.subr.mxu0 0.0
    %251 = vmatpush1.msra.mxu0 0.0
    %252 = vmatprep.subr.mxu0 0.0
    %253 = vmatpush1.msra.mxu0 0.0
    %254 = vmatprep.subr.mxu0 0.0
    %255 = vmatpush1.msra.mxu0 0.0
    %256 = vmatprep.subr.mxu0 0.0
    %257 = vmatpush1.msra.mxu0 0.0
    %258 = vmatprep.subr.mxu0 0.0
    %259 = vmatpush1.msra.mxu0 0.0
    %260 = vmatprep.subr.mxu0 0.0
    %261 = vmatpush1.msra.mxu0 0.0
    %262 = vmatprep.subr.mxu0 0.0
    %263 = vmatpush1.msra.mxu0 0.0
    %264 = vmatprep.subr.mxu0 0.0
    %265 = vmatpush1.msra.mxu0 0.0
    %266 = vmatprep.subr.mxu0 0.0
    %267 = vmatpush1.msra.mxu0 0.0
    %268 = vmatprep.subr.mxu0 0.0
    %269 = vmatpush1.msra.mxu0 0.0
    %270 = vmatprep.subr.mxu0 0.0
    %271 = vmatpush1.msra.mxu0 0.0
    %272 = vmatprep.subr.mxu0 0.0
    %273 = vmatpush1.msra.mxu0 0.0
    %274 = vmatprep.subr.mxu0 0.0
    %275 = vmatpush1.msra.mxu0 0.0
    %276 = vmatprep.subr.mxu0 0.0
    %277 = vmatpush1.msra.mxu0 0.0
    %278 = vmatprep.subr.mxu0 0.0
    %279 = vmatpush1.msra.mxu0 0.0
    %280 = vmatprep.subr.mxu0 0.0
    %281 = vmatpush1.msra.mxu0 0.0
    %282 = vmatprep.subr.mxu0 0.0
    %283 = vmatpush1.msra.mxu0 0.0
    %284 = vmatprep.subr.mxu0 0.0
    %285 = vmatpush1.msra.mxu0 0.0
    %286 = vmatprep.subr.mxu0 0.0
    %287 = vmatpush1.msra.mxu0 0.0
    %288 = vmatprep.subr.mxu0 0.0
    %289 = vmatpush1.msra.mxu0 0.0
    %290 = vmatprep.subr.mxu0 0.0
    %291 = vmatpush1.msra.mxu0 0.0
    %292 = vmatprep.subr.mxu0 0.0
    %293 = vmatpush1.msra.mxu0 0.0
    %294 = vmatprep.subr.mxu0 0.0
    %295 = vmatpush1.msra.mxu0 0.0
    %296 = vmatprep.mubr.f32.mxu0 0.0
    %v297 = vand.u32 %v52, 4294901760
    %v298 = vsub.f32 %v52, %v297
    %299 = vmatmul.mubr.f32.gmra.mrb[0].mxu0 %v298
    %v300 = vpop.f32.mrb[0].mxu0
    %v301 = vadd.f32 %v221, %v300
    %v302 = vpop.f32.mrb[0].mxu0
    %303 = vdwg.mxu0
    %304 = vmatprep.subr.mxu0 0.0
    %v305 = vand.u32 %v46, 4294901760
    %306 = vmatpush1.msra.mxu0 %v305
    %307 = vmatprep.subr.mxu0 0.0
    %v308 = vand.u32 %v47, 4294901760
    %309 = vmatpush1.msra.mxu0 %v308
    %310 = vmatprep.subr.mxu0 0.0
    %v311 = vand.u32 %v48, 4294901760
    %312 = vmatpush1.msra.mxu0 %v311
    %313 = vmatprep.subr.mxu0 0.0
    %v314 = vand.u32 %v49, 4294901760
    %315 = vmatpush1.msra.mxu0 %v314
    %316 = vmatprep.subr.mxu0 0.0
    %317 = vmatpush1.msra.mxu0 0.0
    %318 = vmatprep.subr.mxu0 0.0
    %319 = vmatpush1.msra.mxu0 0.0
    %320 = vmatprep.subr.mxu0 0.0
    %321 = vmatpush1.msra.mxu0 0.0
    %322 = vmatprep.subr.mxu0 0.0
    %323 = vmatpush1.msra.mxu0 0.0
    %324 = vmatprep.subr.mxu0 0.0
    %325 = vmatpush1.msra.mxu0 0.0
    %326 = vmatprep.subr.mxu0 0.0
    %327 = vmatpush1.msra.mxu0 0.0
    %328 = vmatprep.subr.mxu0 0.0
    %329 = vmatpush1.msra.mxu0 0.0
    %330 = vmatprep.subr.mxu0 0.0
    %331 = vmatpush1.msra.mxu0 0.0
    %332 = vmatprep.subr.mxu0 0.0
    %333 = vmatpush1.msra.mxu0 0.0
    %334 = vmatprep.subr.mxu0 0.0
    %335 = vmatpush1.msra.mxu0 0.0
    %336 = vmatprep.subr.mxu0 0.0
    %337 = vmatpush1.msra.mxu0 0.0
    %338 = vmatprep.subr.mxu0 0.0
    %339 = vmatpush1.msra.mxu0 0.0
    %340 = vmatprep.subr.mxu0 0.0
    %341 = vmatpush1.msra.mxu0 0.0
    %342 = vmatprep.subr.mxu0 0.0
    %343 = vmatpush1.msra.mxu0 0.0
    %344 = vmatprep.subr.mxu0 0.0
    %345 = vmatpush1.msra.mxu0 0.0
    %346 = vmatprep.subr.mxu0 0.0
    %347 = vmatpush1.msra.mxu0 0.0
    %348 = vmatprep.subr.mxu0 0.0
    %349 = vmatpush1.msra.mxu0 0.0
    %350 = vmatprep.subr.mxu0 0.0
    %351 = vmatpush1.msra.mxu0 0.0
    %352 = vmatprep.subr.mxu0 0.0
    %353 = vmatpush1.msra.mxu0 0.0
    %354 = vmatprep.subr.mxu0 0.0
    %355 = vmatpush1.msra.mxu0 0.0
    %356 = vmatprep.subr.mxu0 0.0
    %357 = vmatpush1.msra.mxu0 0.0
    %358 = vmatprep.subr.mxu0 0.0
    %359 = vmatpush1.msra.mxu0 0.0
    %360 = vmatprep.subr.mxu0 0.0
    %361 = vmatpush1.msra.mxu0 0.0
    %362 = vmatprep.subr.mxu0 0.0
    %363 = vmatpush1.msra.mxu0 0.0
    %364 = vmatprep.subr.mxu0 0.0
    %365 = vmatpush1.msra.mxu0 0.0
    %366 = vmatprep.subr.mxu0 0.0
    %367 = vmatpush1.msra.mxu0 0.0
    %368 = vmatprep.subr.mxu0 0.0
    %369 = vmatpush1.msra.mxu0 0.0
    %370 = vmatprep.subr.mxu0 0.0
    %371 = vmatpush1.msra.mxu0 0.0
    %372 = vmatprep.mubr.f32.mxu0 0.0
    %v373 = vand.u32 %v52, 4294901760
    %v374 = vsub.f32 %v52, %v373
    %v375 = vand.u32 %v374, 4294901760
    %376 = vmatmul.mubr.f32.gmra.mrb[0].mxu0 %v375
    %v377 = vpop.f32.mrb[0].mxu0
    %v378 = vadd.f32 %v301, %v377
    %v379 = vpop.f32.mrb[0].mxu0
    %380 = vdwg.mxu0
    %381 = vmatprep.subr.mxu0 0.0
    %v382 = vand.u32 %v46, 4294901760
    %v383 = vsub.f32 %v46, %v382
    %v384 = vand.u32 %v383, 4294901760
    %385 = vmatpush1.msra.mxu0 %v384
    %386 = vmatprep.subr.mxu0 0.0
    %v387 = vand.u32 %v47, 4294901760
    %v388 = vsub.f32 %v47, %v387
    %v389 = vand.u32 %v388, 4294901760
    %390 = vmatpush1.msra.mxu0 %v389
    %391 = vmatprep.subr.mxu0 0.0
    %v392 = vand.u32 %v48, 4294901760
    %v393 = vsub.f32 %v48, %v392
    %v394 = vand.u32 %v393, 4294901760
    %395 = vmatpush1.msra.mxu0 %v394
    %396 = vmatprep.subr.mxu0 0.0
    %v397 = vand.u32 %v49, 4294901760
    %v398 = vsub.f32 %v49, %v397
    %v399 = vand.u32 %v398, 4294901760
    %400 = vmatpush1.msra.mxu0 %v399
    %401 = vmatprep.subr.mxu0 0.0
    %402 = vmatpush1.msra.mxu0 0.0
    %403 = vmatprep.subr.mxu0 0.0
    %404 = vmatpush1.msra.mxu0 0.0
    %405 = vmatprep.subr.mxu0 0.0
    %406 = vmatpush1.msra.mxu0 0.0
    %407 = vmatprep.subr.mxu0 0.0
    %408 = vmatpush1.msra.mxu0 0.0
    %409 = vmatprep.subr.mxu0 0.0
    %410 = vmatpush1.msra.mxu0 0.0
    %411 = vmatprep.subr.mxu0 0.0
    %412 = vmatpush1.msra.mxu0 0.0
    %413 = vmatprep.subr.mxu0 0.0
    %414 = vmatpush1.msra.mxu0 0.0
    %415 = vmatprep.subr.mxu0 0.0
    %416 = vmatpush1.msra.mxu0 0.0
    %417 = vmatprep.subr.mxu0 0.0
    %418 = vmatpush1.msra.mxu0 0.0
    %419 = vmatprep.subr.mxu0 0.0
    %420 = vmatpush1.msra.mxu0 0.0
    %421 = vmatprep.subr.mxu0 0.0
    %422 = vmatpush1.msra.mxu0 0.0
    %423 = vmatprep.subr.mxu0 0.0
    %424 = vmatpush1.msra.mxu0 0.0
    %425 = vmatprep.subr.mxu0 0.0
    %426 = vmatpush1.msra.mxu0 0.0
    %427 = vmatprep.subr.mxu0 0.0
    %428 = vmatpush1.msra.mxu0 0.0
    %429 = vmatprep.subr.mxu0 0.0
    %430 = vmatpush1.msra.mxu0 0.0
    %431 = vmatprep.subr.mxu0 0.0
    %432 = vmatpush1.msra.mxu0 0.0
    %433 = vmatprep.subr.mxu0 0.0
    %434 = vmatpush1.msra.mxu0 0.0
    %435 = vmatprep.subr.mxu0 0.0
    %436 = vmatpush1.msra.mxu0 0.0
    %437 = vmatprep.subr.mxu0 0.0
    %438 = vmatpush1.msra.mxu0 0.0
    %439 = vmatprep.subr.mxu0 0.0
    %440 = vmatpush1.msra.mxu0 0.0
    %441 = vmatprep.subr.mxu0 0.0
    %442 = vmatpush1.msra.mxu0 0.0
    %443 = vmatprep.subr.mxu0 0.0
    %444 = vmatpush1.msra.mxu0 0.0
    %445 = vmatprep.subr.mxu0 0.0
    %446 = vmatpush1.msra.mxu0 0.0
    %447 = vmatprep.subr.mxu0 0.0
    %448 = vmatpush1.msra.mxu0 0.0
    %449 = vmatprep.subr.mxu0 0.0
    %450 = vmatpush1.msra.mxu0 0.0
    %451 = vmatprep.subr.mxu0 0.0
    %452 = vmatpush1.msra.mxu0 0.0
    %453 = vmatprep.subr.mxu0 0.0
    %454 = vmatpush1.msra.mxu0 0.0
    %455 = vmatprep.subr.mxu0 0.0
    %456 = vmatpush1.msra.mxu0 0.0
    %457 = vmatprep.mubr.f32.mxu0 0.0
    %v458 = vand.u32 %v52, 4294901760
    %459 = vmatmul.mubr.f32.gmra.mrb[0].mxu0 %v458
    %v460 = vpop.f32.mrb[0].mxu0
    %v461 = vadd.f32 %v378, %v460
    %v462 = vpop.f32.mrb[0].mxu0
    %463 = vdwg.mxu0
    %464 = vmatprep.subr.mxu0 0.0
    %v465 = vand.u32 %v46, 4294901760
    %466 = vmatpush1.msra.mxu0 %v465
    %467 = vmatprep.subr.mxu0 0.0
    %v468 = vand.u32 %v47, 4294901760
    %469 = vmatpush1.msra.mxu0 %v468
    %470 = vmatprep.subr.mxu0 0.0
    %v471 = vand.u32 %v48, 4294901760
    %472 = vmatpush1.msra.mxu0 %v471
    %473 = vmatprep.subr.mxu0 0.0
    %v474 = vand.u32 %v49, 4294901760
    %475 = vmatpush1.msra.mxu0 %v474
    %476 = vmatprep.subr.mxu0 0.0
    %477 = vmatpush1.msra.mxu0 0.0
    %478 = vmatprep.subr.mxu0 0.0
    %479 = vmatpush1.msra.mxu0 0.0
    %480 = vmatprep.subr.mxu0 0.0
    %481 = vmatpush1.msra.mxu0 0.0
    %482 = vmatprep.subr.mxu0 0.0
    %483 = vmatpush1.msra.mxu0 0.0
    %484 = vmatprep.subr.mxu0 0.0
    %485 = vmatpush1.msra.mxu0 0.0
    %486 = vmatprep.subr.mxu0 0.0
    %487 = vmatpush1.msra.mxu0 0.0
    %488 = vmatprep.subr.mxu0 0.0
    %489 = vmatpush1.msra.mxu0 0.0
    %490 = vmatprep.subr.mxu0 0.0
    %491 = vmatpush1.msra.mxu0 0.0
    %492 = vmatprep.subr.mxu0 0.0
    %493 = vmatpush1.msra.mxu0 0.0
    %494 = vmatprep.subr.mxu0 0.0
    %495 = vmatpush1.msra.mxu0 0.0
    %496 = vmatprep.subr.mxu0 0.0
    %497 = vmatpush1.msra.mxu0 0.0
    %498 = vmatprep.subr.mxu0 0.0
    %499 = vmatpush1.msra.mxu0 0.0
    %500 = vmatprep.subr.mxu0 0.0
    %501 = vmatpush1.msra.mxu0 0.0
    %502 = vmatprep.subr.mxu0 0.0
    %503 = vmatpush1.msra.mxu0 0.0
    %504 = vmatprep.subr.mxu0 0.0
    %505 = vmatpush1.msra.mxu0 0.0
    %506 = vmatprep.subr.mxu0 0.0
    %507 = vmatpush1.msra.mxu0 0.0
    %508 = vmatprep.subr.mxu0 0.0
    %509 = vmatpush1.msra.mxu0 0.0
    %510 = vmatprep.subr.mxu0 0.0
    %511 = vmatpush1.msra.mxu0 0.0
    %512 = vmatprep.subr.mxu0 0.0
    %513 = vmatpush1.msra.mxu0 0.0
    %514 = vmatprep.subr.mxu0 0.0
    %515 = vmatpush1.msra.mxu0 0.0
    %516 = vmatprep.subr.mxu0 0.0
    %517 = vmatpush1.msra.mxu0 0.0
    %518 = vmatprep.subr.mxu0 0.0
    %519 = vmatpush1.msra.mxu0 0.0
    %520 = vmatprep.subr.mxu0 0.0
    %521 = vmatpush1.msra.mxu0 0.0
    %522 = vmatprep.subr.mxu0 0.0
    %523 = vmatpush1.msra.mxu0 0.0
    %524 = vmatprep.subr.mxu0 0.0
    %525 = vmatpush1.msra.mxu0 0.0
    %526 = vmatprep.subr.mxu0 0.0
    %527 = vmatpush1.msra.mxu0 0.0
    %528 = vmatprep.subr.mxu0 0.0
    %529 = vmatpush1.msra.mxu0 0.0
    %530 = vmatprep.subr.mxu0 0.0
    %531 = vmatpush1.msra.mxu0 0.0
    %532 = vmatprep.mubr.f32.mxu0 0.0
    %v533 = vand.u32 %v52, 4294901760
    %534 = vmatmul.mubr.f32.gmra.mrb[0].mxu0 %v533
    %v535 = vpop.f32.mrb[0].mxu0
    %v536 = vadd.f32 %v461, %v535
    %v537 = vpop.f32.mrb[0].mxu0
    %538 = vdwg.mxu0
    %vm539 = vcmask 64512
    %v541 = vsel %vm539, %v43, 0
    %543 = vmatprep.subr.mxu0 0.0
    %v544 = vand.u32 %v44, 4294901760
    %545 = vmatpush1.msra.mxu0 %v544
    %546 = vmatprep.subr.mxu0 0.0
    %547 = vmatpush1.msra.mxu0 0.0
    %548 = vmatprep.subr.mxu0 0.0
    %549 = vmatpush1.msra.mxu0 0.0
    %550 = vmatprep.subr.mxu0 0.0
    %551 = vmatpush1.msra.mxu0 0.0
    %552 = vmatprep.subr.mxu0 0.0
    %553 = vmatpush1.msra.mxu0 0.0
    %554 = vmatprep.subr.mxu0 0.0
    %555 = vmatpush1.msra.mxu0 0.0
    %556 = vmatprep.subr.mxu0 0.0
    %557 = vmatpush1.msra.mxu0 0.0
    %558 = vmatprep.subr.mxu0 0.0
    %559 = vmatpush1.msra.mxu0 0.0
    %560 = vmatprep.subr.mxu0 0.0
    %561 = vmatpush1.msra.mxu0 0.0
    %562 = vmatprep.subr.mxu0 0.0
    %563 = vmatpush1.msra.mxu0 0.0
    %564 = vmatprep.subr.mxu0 0.0
    %565 = vmatpush1.msra.mxu0 0.0
    %566 = vmatprep.subr.mxu0 0.0
    %567 = vmatpush1.msra.mxu0 0.0
    %568 = vmatprep.subr.mxu0 0.0
    %569 = vmatpush1.msra.mxu0 0.0
    %570 = vmatprep.subr.mxu0 0.0
    %571 = vmatpush1.msra.mxu0 0.0
    %572 = vmatprep.subr.mxu0 0.0
    %573 = vmatpush1.msra.mxu0 0.0
    %574 = vmatprep.subr.mxu0 0.0
    %575 = vmatpush1.msra.mxu0 0.0
    %576 = vmatprep.subr.mxu0 0.0
    %577 = vmatpush1.msra.mxu0 0.0
    %578 = vmatprep.subr.mxu0 0.0
    %579 = vmatpush1.msra.mxu0 0.0
    %580 = vmatprep.subr.mxu0 0.0
    %581 = vmatpush1.msra.mxu0 0.0
    %582 = vmatprep.subr.mxu0 0.0
    %583 = vmatpush1.msra.mxu0 0.0
    %584 = vmatprep.subr.mxu0 0.0
    %585 = vmatpush1.msra.mxu0 0.0
    %586 = vmatprep.subr.mxu0 0.0
    %587 = vmatpush1.msra.mxu0 0.0
    %588 = vmatprep.subr.mxu0 0.0
    %589 = vmatpush1.msra.mxu0 0.0
    %590 = vmatprep.subr.mxu0 0.0
    %591 = vmatpush1.msra.mxu0 0.0
    %592 = vmatprep.subr.mxu0 0.0
    %593 = vmatpush1.msra.mxu0 0.0
    %594 = vmatprep.subr.mxu0 0.0
    %595 = vmatpush1.msra.mxu0 0.0
    %596 = vmatprep.subr.mxu0 0.0
    %597 = vmatpush1.msra.mxu0 0.0
    %598 = vmatprep.subr.mxu0 0.0
    %599 = vmatpush1.msra.mxu0 0.0
    %600 = vmatprep.subr.mxu0 0.0
    %601 = vmatpush1.msra.mxu0 0.0
    %602 = vmatprep.subr.mxu0 0.0
    %603 = vmatpush1.msra.mxu0 0.0
    %604 = vmatprep.subr.mxu0 0.0
    %605 = vmatpush1.msra.mxu0 0.0
    %606 = vmatprep.subr.mxu0 0.0
    %607 = vmatpush1.msra.mxu0 0.0
    %608 = vmatprep.mubr.f32.mxu0 0.0
    %v609 = vand.u32 %v541, 4294901760
    %v610 = vsub.f32 %v541, %v609
    %v611 = vand.u32 %v610, 4294901760
    %v612 = vsub.f32 %v610, %v611
    %v613 = vand.u32 %v612, 4294901760
    %614 = vmatmul.mubr.f32.gmra.mrb[0].mxu0 %v613
    %v615 = vpop.f32.mrb[0].mxu0
    %v616 = vadd.f32 %v536, %v615
    %v617 = vpop.f32.mrb[0].mxu0
    %618 = vdwg.mxu0
    %619 = vmatprep.subr.mxu0 0.0
    %v620 = vand.u32 %v44, 4294901760
    %v621 = vsub.f32 %v44, %v620
    %v622 = vand.u32 %v621, 4294901760
    %v623 = vsub.f32 %v621, %v622
    %v624 = vand.u32 %v623, 4294901760
    %625 = vmatpush1.msra.mxu0 %v624
    %626 = vmatprep.subr.mxu0 0.0
    %627 = vmatpush1.msra.mxu0 0.0
    %628 = vmatprep.subr.mxu0 0.0
    %629 = vmatpush1.msra.mxu0 0.0
    %630 = vmatprep.subr.mxu0 0.0
    %631 = vmatpush1.msra.mxu0 0.0
    %632 = vmatprep.subr.mxu0 0.0
    %633 = vmatpush1.msra.mxu0 0.0
    %634 = vmatprep.subr.mxu0 0.0
    %635 = vmatpush1.msra.mxu0 0.0
    %636 = vmatprep.subr.mxu0 0.0
    %637 = vmatpush1.msra.mxu0 0.0
    %638 = vmatprep.subr.mxu0 0.0
    %639 = vmatpush1.msra.mxu0 0.0
    %640 = vmatprep.subr.mxu0 0.0
    %641 = vmatpush1.msra.mxu0 0.0
    %642 = vmatprep.subr.mxu0 0.0
    %643 = vmatpush1.msra.mxu0 0.0
    %644 = vmatprep.subr.mxu0 0.0
    %645 = vmatpush1.msra.mxu0 0.0
    %646 = vmatprep.subr.mxu0 0.0
    %647 = vmatpush1.msra.mxu0 0.0
    %648 = vmatprep.subr.mxu0 0.0
    %649 = vmatpush1.msra.mxu0 0.0
    %650 = vmatprep.subr.mxu0 0.0
    %651 = vmatpush1.msra.mxu0 0.0
    %652 = vmatprep.subr.mxu0 0.0
    %653 = vmatpush1.msra.mxu0 0.0
    %654 = vmatprep.subr.mxu0 0.0
    %655 = vmatpush1.msra.mxu0 0.0
    %656 = vmatprep.subr.mxu0 0.0
    %657 = vmatpush1.msra.mxu0 0.0
    %658 = vmatprep.subr.mxu0 0.0
    %659 = vmatpush1.msra.mxu0 0.0
    %660 = vmatprep.subr.mxu0 0.0
    %661 = vmatpush1.msra.mxu0 0.0
    %662 = vmatprep.subr.mxu0 0.0
    %663 = vmatpush1.msra.mxu0 0.0
    %664 = vmatprep.subr.mxu0 0.0
    %665 = vmatpush1.msra.mxu0 0.0
    %666 = vmatprep.subr.mxu0 0.0
    %667 = vmatpush1.msra.mxu0 0.0
    %668 = vmatprep.subr.mxu0 0.0
    %669 = vmatpush1.msra.mxu0 0.0
    %670 = vmatprep.subr.mxu0 0.0
    %671 = vmatpush1.msra.mxu0 0.0
    %672 = vmatprep.subr.mxu0 0.0
    %673 = vmatpush1.msra.mxu0 0.0
    %674 = vmatprep.subr.mxu0 0.0
    %675 = vmatpush1.msra.mxu0 0.0
    %676 = vmatprep.subr.mxu0 0.0
    %677 = vmatpush1.msra.mxu0 0.0
    %678 = vmatprep.subr.mxu0 0.0
    %679 = vmatpush1.msra.mxu0 0.0
    %680 = vmatprep.subr.mxu0 0.0
    %681 = vmatpush1.msra.mxu0 0.0
    %682 = vmatprep.subr.mxu0 0.0
    %683 = vmatpush1.msra.mxu0 0.0
    %684 = vmatprep.subr.mxu0 0.0
    %685 = vmatpush1.msra.mxu0 0.0
    %686 = vmatprep.subr.mxu0 0.0
    %687 = vmatpush1.msra.mxu0 0.0
    %688 = vmatprep.mubr.f32.mxu0 0.0
    %v689 = vand.u32 %v541, 4294901760
    %690 = vmatmul.mubr.f32.gmra.mrb[0].mxu0 %v689
    %v691 = vpop.f32.mrb[0].mxu0
    %v692 = vadd.f32 %v616, %v691
    %v693 = vpop.f32.mrb[0].mxu0
    %694 = vdwg.mxu0
    %695 = vmatprep.subr.mxu0 0.0
    %v696 = vand.u32 %v44, 4294901760
    %v697 = vsub.f32 %v44, %v696
    %698 = vmatpush1.msra.mxu0 %v697
    %699 = vmatprep.subr.mxu0 0.0
    %700 = vmatpush1.msra.mxu0 0.0
    %701 = vmatprep.subr.mxu0 0.0
    %702 = vmatpush1.msra.mxu0 0.0
    %703 = vmatprep.subr.mxu0 0.0
    %704 = vmatpush1.msra.mxu0 0.0
    %705 = vmatprep.subr.mxu0 0.0
    %706 = vmatpush1.msra.mxu0 0.0
    %707 = vmatprep.subr.mxu0 0.0
    %708 = vmatpush1.msra.mxu0 0.0
    %709 = vmatprep.subr.mxu0 0.0
    %710 = vmatpush1.msra.mxu0 0.0
    %711 = vmatprep.subr.mxu0 0.0
    %712 = vmatpush1.msra.mxu0 0.0
    %713 = vmatprep.subr.mxu0 0.0
    %714 = vmatpush1.msra.mxu0 0.0
    %715 = vmatprep.subr.mxu0 0.0
    %716 = vmatpush1.msra.mxu0 0.0
    %717 = vmatprep.subr.mxu0 0.0
    %718 = vmatpush1.msra.mxu0 0.0
    %719 = vmatprep.subr.mxu0 0.0
    %720 = vmatpush1.msra.mxu0 0.0
    %721 = vmatprep.subr.mxu0 0.0
    %722 = vmatpush1.msra.mxu0 0.0
    %723 = vmatprep.subr.mxu0 0.0
    %724 = vmatpush1.msra.mxu0 0.0
    %725 = vmatprep.subr.mxu0 0.0
    %726 = vmatpush1.msra.mxu0 0.0
    %727 = vmatprep.subr.mxu0 0.0
    %728 = vmatpush1.msra.mxu0 0.0
    %729 = vmatprep.subr.mxu0 0.0
    %730 = vmatpush1.msra.mxu0 0.0
    %731 = vmatprep.subr.mxu0 0.0
    %732 = vmatpush1.msra.mxu0 0.0
    %733 = vmatprep.subr.mxu0 0.0
    %734 = vmatpush1.msra.mxu0 0.0
    %735 = vmatprep.subr.mxu0 0.0
    %736 = vmatpush1.msra.mxu0 0.0
    %737 = vmatprep.subr.mxu0 0.0
    %738 = vmatpush1.msra.mxu0 0.0
    %739 = vmatprep.subr.mxu0 0.0
    %740 = vmatpush1.msra.mxu0 0.0
    %741 = vmatprep.subr.mxu0 0.0
    %742 = vmatpush1.msra.mxu0 0.0
    %743 = vmatprep.subr.mxu0 0.0
    %744 = vmatpush1.msra.mxu0 0.0
    %745 = vmatprep.subr.mxu0 0.0
    %746 = vmatpush1.msra.mxu0 0.0
    %747 = vmatprep.subr.mxu0 0.0
    %748 = vmatpush1.msra.mxu0 0.0
    %749 = vmatprep.subr.mxu0 0.0
    %750 = vmatpush1.msra.mxu0 0.0
    %751 = vmatprep.subr.mxu0 0.0
    %752 = vmatpush1.msra.mxu0 0.0
    %753 = vmatprep.subr.mxu0 0.0
    %754 = vmatpush1.msra.mxu0 0.0
    %755 = vmatprep.subr.mxu0 0.0
    %756 = vmatpush1.msra.mxu0 0.0
    %757 = vmatprep.subr.mxu0 0.0
    %758 = vmatpush1.msra.mxu0 0.0
    %759 = vmatprep.subr.mxu0 0.0
    %760 = vmatpush1.msra.mxu0 0.0
    %761 = vmatprep.mubr.f32.mxu0 0.0
    %v762 = vand.u32 %v541, 4294901760
    %v763 = vsub.f32 %v541, %v762
    %764 = vmatmul.mubr.f32.gmra.mrb[0].mxu0 %v763
    %v765 = vpop.f32.mrb[0].mxu0
    %v766 = vadd.f32 %v692, %v765
    %v767 = vpop.f32.mrb[0].mxu0
    %768 = vdwg.mxu0
    %769 = vmatprep.subr.mxu0 0.0
    %v770 = vand.u32 %v44, 4294901760
    %771 = vmatpush1.msra.mxu0 %v770
    %772 = vmatprep.subr.mxu0 0.0
    %773 = vmatpush1.msra.mxu0 0.0
    %774 = vmatprep.subr.mxu0 0.0
    %775 = vmatpush1.msra.mxu0 0.0
    %776 = vmatprep.subr.mxu0 0.0
    %777 = vmatpush1.msra.mxu0 0.0
    %778 = vmatprep.subr.mxu0 0.0
    %779 = vmatpush1.msra.mxu0 0.0
    %780 = vmatprep.subr.mxu0 0.0
    %781 = vmatpush1.msra.mxu0 0.0
    %782 = vmatprep.subr.mxu0 0.0
    %783 = vmatpush1.msra.mxu0 0.0
    %784 = vmatprep.subr.mxu0 0.0
    %785 = vmatpush1.msra.mxu0 0.0
    %786 = vmatprep.subr.mxu0 0.0
    %787 = vmatpush1.msra.mxu0 0.0
    %788 = vmatprep.subr.mxu0 0.0
    %789 = vmatpush1.msra.mxu0 0.0
    %790 = vmatprep.subr.mxu0 0.0
    %791 = vmatpush1.msra.mxu0 0.0
    %792 = vmatprep.subr.mxu0 0.0
    %793 = vmatpush1.msra.mxu0 0.0
    %794 = vmatprep.subr.mxu0 0.0
    %795 = vmatpush1.msra.mxu0 0.0
    %796 = vmatprep.subr.mxu0 0.0
    %797 = vmatpush1.msra.mxu0 0.0
    %798 = vmatprep.subr.mxu0 0.0
    %799 = vmatpush1.msra.mxu0 0.0
    %800 = vmatprep.subr.mxu0 0.0
    %801 = vmatpush1.msra.mxu0 0.0
    %802 = vmatprep.subr.mxu0 0.0
    %803 = vmatpush1.msra.mxu0 0.0
    %804 = vmatprep.subr.mxu0 0.0
    %805 = vmatpush1.msra.mxu0 0.0
    %806 = vmatprep.subr.mxu0 0.0
    %807 = vmatpush1.msra.mxu0 0.0
    %808 = vmatprep.subr.mxu0 0.0
    %809 = vmatpush1.msra.mxu0 0.0
    %810 = vmatprep.subr.mxu0 0.0
    %811 = vmatpush1.msra.mxu0 0.0
    %812 = vmatprep.subr.mxu0 0.0
    %813 = vmatpush1.msra.mxu0 0.0
    %814 = vmatprep.subr.mxu0 0.0
    %815 = vmatpush1.msra.mxu0 0.0
    %816 = vmatprep.subr.mxu0 0.0
    %817 = vmatpush1.msra.mxu0 0.0
    %818 = vmatprep.subr.mxu0 0.0
    %819 = vmatpush1.msra.mxu0 0.0
    %820 = vmatprep.subr.mxu0 0.0
    %821 = vmatpush1.msra.mxu0 0.0
    %822 = vmatprep.subr.mxu0 0.0
    %823 = vmatpush1.msra.mxu0 0.0
    %824 = vmatprep.subr.mxu0 0.0
    %825 = vmatpush1.msra.mxu0 0.0
    %826 = vmatprep.subr.mxu0 0.0
    %827 = vmatpush1.msra.mxu0 0.0
    %828 = vmatprep.subr.mxu0 0.0
    %829 = vmatpush1.msra.mxu0 0.0
    %830 = vmatprep.subr.mxu0 0.0
    %831 = vmatpush1.msra.mxu0 0.0
    %832 = vmatprep.subr.mxu0 0.0
    %833 = vmatpush1.msra.mxu0 0.0
    %834 = vmatprep.mubr.f32.mxu0 0.0
    %v835 = vand.u32 %v541, 4294901760
    %v836 = vsub.f32 %v541, %v835
    %v837 = vand.u32 %v836, 4294901760
    %838 = vmatmul.mubr.f32.gmra.mrb[0].mxu0 %v837
    %v839 = vpop.f32.mrb[0].mxu0
    %v840 = vadd.f32 %v766, %v839
    %v841 = vpop.f32.mrb[0].mxu0
    %842 = vdwg.mxu0
    %843 = vmatprep.subr.mxu0 0.0
    %v844 = vand.u32 %v44, 4294901760
    %v845 = vsub.f32 %v44, %v844
    %v846 = vand.u32 %v845, 4294901760
    %847 = vmatpush1.msra.mxu0 %v846
    %848 = vmatprep.subr.mxu0 0.0
    %849 = vmatpush1.msra.mxu0 0.0
    %850 = vmatprep.subr.mxu0 0.0
    %851 = vmatpush1.msra.mxu0 0.0
    %852 = vmatprep.subr.mxu0 0.0
    %853 = vmatpush1.msra.mxu0 0.0
    %854 = vmatprep.subr.mxu0 0.0
    %855 = vmatpush1.msra.mxu0 0.0
    %856 = vmatprep.subr.mxu0 0.0
    %857 = vmatpush1.msra.mxu0 0.0
    %858 = vmatprep.subr.mxu0 0.0
    %859 = vmatpush1.msra.mxu0 0.0
    %860 = vmatprep.subr.mxu0 0.0
    %861 = vmatpush1.msra.mxu0 0.0
    %862 = vmatprep.subr.mxu0 0.0
    %863 = vmatpush1.msra.mxu0 0.0
    %864 = vmatprep.subr.mxu0 0.0
    %865 = vmatpush1.msra.mxu0 0.0
    %866 = vmatprep.subr.mxu0 0.0
    %867 = vmatpush1.msra.mxu0 0.0
    %868 = vmatprep.subr.mxu0 0.0
    %869 = vmatpush1.msra.mxu0 0.0
    %870 = vmatprep.subr.mxu0 0.0
    %871 = vmatpush1.msra.mxu0 0.0
    %872 = vmatprep.subr.mxu0 0.0
    %873 = vmatpush1.msra.mxu0 0.0
    %874 = vmatprep.subr.mxu0 0.0
    %875 = vmatpush1.msra.mxu0 0.0
    %876 = vmatprep.subr.mxu0 0.0
    %877 = vmatpush1.msra.mxu0 0.0
    %878 = vmatprep.subr.mxu0 0.0
    %879 = vmatpush1.msra.mxu0 0.0
    %880 = vmatprep.subr.mxu0 0.0
    %881 = vmatpush1.msra.mxu0 0.0
    %882 = vmatprep.subr.mxu0 0.0
    %883 = vmatpush1.msra.mxu0 0.0
    %884 = vmatprep.subr.mxu0 0.0
    %885 = vmatpush1.msra.mxu0 0.0
    %886 = vmatprep.subr.mxu0 0.0
    %887 = vmatpush1.msra.mxu0 0.0
    %888 = vmatprep.subr.mxu0 0.0
    %889 = vmatpush1.msra.mxu0 0.0
    %890 = vmatprep.subr.mxu0 0.0
    %891 = vmatpush1.msra.mxu0 0.0
    %892 = vmatprep.subr.mxu0 0.0
    %893 = vmatpush1.msra.mxu0 0.0
    %894 = vmatprep.subr.mxu0 0.0
    %895 = vmatpush1.msra.mxu0 0.0
    %896 = vmatprep.subr.mxu0 0.0
    %897 = vmatpush1.msra.mxu0 0.0
    %898 = vmatprep.subr.mxu0 0.0
    %899 = vmatpush1.msra.mxu0 0.0
    %900 = vmatprep.subr.mxu0 0.0
    %901 = vmatpush1.msra.mxu0 0.0
    %902 = vmatprep.subr.mxu0 0.0
    %903 = vmatpush1.msra.mxu0 0.0
    %904 = vmatprep.subr.mxu0 0.0
    %905 = vmatpush1.msra.mxu0 0.0
    %906 = vmatprep.subr.mxu0 0.0
    %907 = vmatpush1.msra.mxu0 0.0
    %908 = vmatprep.subr.mxu0 0.0
    %909 = vmatpush1.msra.mxu0 0.0
    %910 = vmatprep.mubr.f32.mxu0 0.0
    %v911 = vand.u32 %v541, 4294901760
    %912 = vmatmul.mubr.f32.gmra.mrb[0].mxu0 %v911
    %v913 = vpop.f32.mrb[0].mxu0
    %v914 = vadd.f32 %v840, %v913
    %v915 = vpop.f32.mrb[0].mxu0
    %916 = vdwg.mxu0
    %917 = vmatprep.subr.mxu0 0.0
    %v918 = vand.u32 %v44, 4294901760
    %919 = vmatpush1.msra.mxu0 %v918
    %920 = vmatprep.subr.mxu0 0.0
    %921 = vmatpush1.msra.mxu0 0.0
    %922 = vmatprep.subr.mxu0 0.0
    %923 = vmatpush1.msra.mxu0 0.0
    %924 = vmatprep.subr.mxu0 0.0
    %925 = vmatpush1.msra.mxu0 0.0
    %926 = vmatprep.subr.mxu0 0.0
    %927 = vmatpush1.msra.mxu0 0.0
    %928 = vmatprep.subr.mxu0 0.0
    %929 = vmatpush1.msra.mxu0 0.0
    %930 = vmatprep.subr.mxu0 0.0
    %931 = vmatpush1.msra.mxu0 0.0
    %932 = vmatprep.subr.mxu0 0.0
    %933 = vmatpush1.msra.mxu0 0.0
    %934 = vmatprep.subr.mxu0 0.0
    %935 = vmatpush1.msra.mxu0 0.0
    %936 = vmatprep.subr.mxu0 0.0
    %937 = vmatpush1.msra.mxu0 0.0
    %938 = vmatprep.subr.mxu0 0.0
    %939 = vmatpush1.msra.mxu0 0.0
    %940 = vmatprep.subr.mxu0 0.0
    %941 = vmatpush1.msra.mxu0 0.0
    %942 = vmatprep.subr.mxu0 0.0
    %943 = vmatpush1.msra.mxu0 0.0
    %944 = vmatprep.subr.mxu0 0.0
    %945 = vmatpush1.msra.mxu0 0.0
    %946 = vmatprep.subr.mxu0 0.0
    %947 = vmatpush1.msra.mxu0 0.0
    %948 = vmatprep.subr.mxu0 0.0
    %949 = vmatpush1.msra.mxu0 0.0
    %950 = vmatprep.subr.mxu0 0.0
    %951 = vmatpush1.msra.mxu0 0.0
    %952 = vmatprep.subr.mxu0 0.0
    %953 = vmatpush1.msra.mxu0 0.0
    %954 = vmatprep.subr.mxu0 0.0
    %955 = vmatpush1.msra.mxu0 0.0
    %956 = vmatprep.subr.mxu0 0.0
    %957 = vmatpush1.msra.mxu0 0.0
    %958 = vmatprep.subr.mxu0 0.0
    %959 = vmatpush1.msra.mxu0 0.0
    %960 = vmatprep.subr.mxu0 0.0
    %961 = vmatpush1.msra.mxu0 0.0
    %962 = vmatprep.subr.mxu0 0.0
    %963 = vmatpush1.msra.mxu0 0.0
    %964 = vmatprep.subr.mxu0 0.0
    %965 = vmatpush1.msra.mxu0 0.0
    %966 = vmatprep.subr.mxu0 0.0
    %967 = vmatpush1.msra.mxu0 0.0
    %968 = vmatprep.subr.mxu0 0.0
    %969 = vmatpush1.msra.mxu0 0.0
    %970 = vmatprep.subr.mxu0 0.0
    %971 = vmatpush1.msra.mxu0 0.0
    %972 = vmatprep.subr.mxu0 0.0
    %973 = vmatpush1.msra.mxu0 0.0
    %974 = vmatprep.subr.mxu0 0.0
    %975 = vmatpush1.msra.mxu0 0.0
    %976 = vmatprep.subr.mxu0 0.0
    %977 = vmatpush1.msra.mxu0 0.0
    %978 = vmatprep.subr.mxu0 0.0
    %979 = vmatpush1.msra.mxu0 0.0
    %980 = vmatprep.subr.mxu0 0.0
    %981 = vmatpush1.msra.mxu0 0.0
    %982 = vmatprep.mubr.f32.mxu0 0.0
    %v983 = vand.u32 %v541, 4294901760
    %984 = vmatmul.mubr.f32.gmra.mrb[0].mxu0 %v983
    %v985 = vpop.f32.mrb[0].mxu0
    %v986 = vadd.f32 %v914, %v985
    %v987 = vpop.f32.mrb[0].mxu0
    %988 = vdwg.mxu0
    %v989 = vld [vmem:[%s5] sm:$0x1]
    %v991 = vlaneseq
    %v992 = vshrl.u32 %v991, 7
    %v993 = vsub.s32 0, %v992
    %v994 = vrot.slane %v989, %v993
    %v996 = vadd.f32 %v986, %v994
    %v997 = vlaneseq
    %v998 = vand.u32 %v997, 127
    %vm999 = vcmp.ge.s32.totalorder %v998, 64
    %vm1000 = vcmp.lt.s32.totalorder %v998, 96
    %vm1001 = vmand %vm999, %vm1000
    %v1002 = vxor.u32 %v996, 2147483648
    %v1003 = vmul.f32 %v1002, 1.442695
    %v1004 = vpow.pop %v1003
    %v1005 = vadd.f32 %v1004, 1.0
    %v1006 = vrcp.pop %v1005
    %v1007 = vmul.f32 1.0, %v1006
    %v1008 = vmul.f32 %v1007, 2.0
    %v1009 = vsub.f32 %v1008, 1.0
    %v1010 = vsel %vm1001, %v1009, %v1007
    %v1011 = vld [vmem:[%s2] sm:$0xff]
    %1013 = vrot.lane.b32.xlu0 %v1011, 32
    %v1014 = vpop.permute.xlu0 %1013
    %v1016 = vmul.f32 %v1010, %v1014
    %1018 = vrot.lane.b32.xlu0 %v1010, 64
    %v1019 = vpop.permute.xlu0 %1018
    %v1021 = vmul.f32 %v1010, %v1019
    %1023 = vrot.lane.b32.xlu0 %v1021, 32
    %v1024 = vpop.permute.xlu0 %1023
    %v1026 = vadd.f32 %v1016, %v1024
    %v1027 = vtanh.pop %v1026
    %1029 = vrot.lane.b32.xlu0 %v1027, 64
    %v1030 = vpop.permute.xlu0 %1029
    %v1032 = vmul.f32 %v1010, %v1030
    %v1033 = vld [vmem:[#allocation2] sm:$0xff]
    %v1034 = vld [vmem:[#allocation2 + $0x8] sm:$0xff]
    %v1035 = vld [vmem:[#allocation2 + $0x10] sm:$0xff]
    %v1036 = vld [vmem:[#allocation2 + $0x18] sm:$0xff]
    %v1037 = vld [vmem:[%s7] sm:$0x1]
    %v1039 = vlaneseq
    %v1040 = vshrl.u32 %v1039, 7
    %v1041 = vsub.s32 0, %v1040
    %v1042 = vrot.slane %v1037, %v1041
    %1045 = vrot.lane.b32.xlu0 %v1032, 32
    %v1046 = vpop.permute.xlu0 %1045
    %v1047 = vsel %vm50, %v1046, 0
    %1049 = vmatprep.subr.mxu0 0.0
    %v1050 = vand.u32 %v1033, 4294901760
    %1051 = vmatpush1.msra.mxu0 %v1050
    %1052 = vmatprep.subr.mxu0 0.0
    %v1053 = vand.u32 %v1034, 4294901760
    %1054 = vmatpush1.msra.mxu0 %v1053
    %1055 = vmatprep.subr.mxu0 0.0
    %v1056 = vand.u32 %v1035, 4294901760
    %1057 = vmatpush1.msra.mxu0 %v1056
    %1058 = vmatprep.subr.mxu0 0.0
    %v1059 = vand.u32 %v1036, 4294901760
    %1060 = vmatpush1.msra.mxu0 %v1059
    %1061 = vmatprep.subr.mxu0 0.0
    %1062 = vmatpush1.msra.mxu0 0.0
    %1063 = vmatprep.subr.mxu0 0.0
    %1064 = vmatpush1.msra.mxu0 0.0
    %1065 = vmatprep.subr.mxu0 0.0
    %1066 = vmatpush1.msra.mxu0 0.0
    %1067 = vmatprep.subr.mxu0 0.0
    %1068 = vmatpush1.msra.mxu0 0.0
    %1069 = vmatprep.subr.mxu0 0.0
    %1070 = vmatpush1.msra.mxu0 0.0
    %1071 = vmatprep.subr.mxu0 0.0
    %1072 = vmatpush1.msra.mxu0 0.0
    %1073 = vmatprep.subr.mxu0 0.0
    %1074 = vmatpush1.msra.mxu0 0.0
    %1075 = vmatprep.subr.mxu0 0.0
    %1076 = vmatpush1.msra.mxu0 0.0
    %1077 = vmatprep.subr.mxu0 0.0
    %1078 = vmatpush1.msra.mxu0 0.0
    %1079 = vmatprep.subr.mxu0 0.0
    %1080 = vmatpush1.msra.mxu0 0.0
    %1081 = vmatprep.subr.mxu0 0.0
    %1082 = vmatpush1.msra.mxu0 0.0
    %1083 = vmatprep.subr.mxu0 0.0
    %1084 = vmatpush1.msra.mxu0 0.0
    %1085 = vmatprep.subr.mxu0 0.0
    %1086 = vmatpush1.msra.mxu0 0.0
    %1087 = vmatprep.subr.mxu0 0.0
    %1088 = vmatpush1.msra.mxu0 0.0
    %1089 = vmatprep.subr.mxu0 0.0
    %1090 = vmatpush1.msra.mxu0 0.0
    %1091 = vmatprep.subr.mxu0 0.0
    %1092 = vmatpush1.msra.mxu0 0.0
    %1093 = vmatprep.subr.mxu0 0.0
    %1094 = vmatpush1.msra.mxu0 0.0
    %1095 = vmatprep.subr.mxu0 0.0
    %1096 = vmatpush1.msra.mxu0 0.0
    %1097 = vmatprep.subr.mxu0 0.0
    %1098 = vmatpush1.msra.mxu0 0.0
    %1099 = vmatprep.subr.mxu0 0.0
    %1100 = vmatpush1.msra.mxu0 0.0
    %1101 = vmatprep.subr.mxu0 0.0
    %1102 = vmatpush1.msra.mxu0 0.0
    %1103 = vmatprep.subr.mxu0 0.0
    %1104 = vmatpush1.msra.mxu0 0.0
    %1105 = vmatprep.subr.mxu0 0.0
    %1106 = vmatpush1.msra.mxu0 0.0
    %1107 = vmatprep.subr.mxu0 0.0
    %1108 = vmatpush1.msra.mxu0 0.0
    %1109 = vmatprep.subr.mxu0 0.0
    %1110 = vmatpush1.msra.mxu0 0.0
    %1111 = vmatprep.subr.mxu0 0.0
    %1112 = vmatpush1.msra.mxu0 0.0
    %1113 = vmatprep.subr.mxu0 0.0
    %1114 = vmatpush1.msra.mxu0 0.0
    %1115 = vmatprep.subr.mxu0 0.0
    %1116 = vmatpush1.msra.mxu0 0.0
    %1117 = vmatprep.mubr.f32.mxu0 0.0
    %v1118 = vand.u32 %v1047, 4294901760
    %v1119 = vsub.f32 %v1047, %v1118
    %v1120 = vand.u32 %v1119, 4294901760
    %v1121 = vsub.f32 %v1119, %v1120
    %v1122 = vand.u32 %v1121, 4294901760
    %1123 = vmatmul.mubr.f32.gmra.mrb[0].mxu0 %v1122
    %v1124 = vpop.f32.mrb[0].mxu0
    %v1125 = vadd.f32 %v1042, %v1124
    %v1126 = vpop.f32.mrb[0].mxu0
    %1127 = vdwg.mxu0
    %1128 = vmatprep.subr.mxu0 0.0
    %v1129 = vand.u32 %v1033, 4294901760
    %v1130 = vsub.f32 %v1033, %v1129
    %v1131 = vand.u32 %v1130, 4294901760
    %v1132 = vsub.f32 %v1130, %v1131
    %v1133 = vand.u32 %v1132, 4294901760
    %1134 = vmatpush1.msra.mxu0 %v1133
    %1135 = vmatprep.subr.mxu0 0.0
    %v1136 = vand.u32 %v1034, 4294901760
    %v1137 = vsub.f32 %v1034, %v1136
    %v1138 = vand.u32 %v1137, 4294901760
    %v1139 = vsub.f32 %v1137, %v1138
    %v1140 = vand.u32 %v1139, 4294901760
    %1141 = vmatpush1.msra.mxu0 %v1140
    %1142 = vmatprep.subr.mxu0 0.0
    %v1143 = vand.u32 %v1035, 4294901760
    %v1144 = vsub.f32 %v1035, %v1143
    %v1145 = vand.u32 %v1144, 4294901760
    %v1146 = vsub.f32 %v1144, %v1145
    %v1147 = vand.u32 %v1146, 4294901760
    %1148 = vmatpush1.msra.mxu0 %v1147
    %1149 = vmatprep.subr.mxu0 0.0
    %v1150 = vand.u32 %v1036, 4294901760
    %v1151 = vsub.f32 %v1036, %v1150
    %v1152 = vand.u32 %v1151, 4294901760
    %v1153 = vsub.f32 %v1151, %v1152
    %v1154 = vand.u32 %v1153, 4294901760
    %1155 = vmatpush1.msra.mxu0 %v1154
    %1156 = vmatprep.subr.mxu0 0.0
    %1157 = vmatpush1.msra.mxu0 0.0
    %1158 = vmatprep.subr.mxu0 0.0
    %1159 = vmatpush1.msra.mxu0 0.0
    %1160 = vmatprep.subr.mxu0 0.0
    %1161 = vmatpush1.msra.mxu0 0.0
    %1162 = vmatprep.subr.mxu0 0.0
    %1163 = vmatpush1.msra.mxu0 0.0
    %1164 = vmatprep.subr.mxu0 0.0
    %1165 = vmatpush1.msra.mxu0 0.0
    %1166 = vmatprep.subr.mxu0 0.0
    %1167 = vmatpush1.msra.mxu0 0.0
    %1168 = vmatprep.subr.mxu0 0.0
    %1169 = vmatpush1.msra.mxu0 0.0
    %1170 = vmatprep.subr.mxu0 0.0
    %1171 = vmatpush1.msra.mxu0 0.0
    %1172 = vmatprep.subr.mxu0 0.0
    %1173 = vmatpush1.msra.mxu0 0.0
    %1174 = vmatprep.subr.mxu0 0.0
    %1175 = vmatpush1.msra.mxu0 0.0
    %1176 = vmatprep.subr.mxu0 0.0
    %1177 = vmatpush1.msra.mxu0 0.0
    %1178 = vmatprep.subr.mxu0 0.0
    %1179 = vmatpush1.msra.mxu0 0.0
    %1180 = vmatprep.subr.mxu0 0.0
    %1181 = vmatpush1.msra.mxu0 0.0
    %1182 = vmatprep.subr.mxu0 0.0
    %1183 = vmatpush1.msra.mxu0 0.0
    %1184 = vmatprep.subr.mxu0 0.0
    %1185 = vmatpush1.msra.mxu0 0.0
    %1186 = vmatprep.subr.mxu0 0.0
    %1187 = vmatpush1.msra.mxu0 0.0
    %1188 = vmatprep.subr.mxu0 0.0
    %1189 = vmatpush1.msra.mxu0 0.0
    %1190 = vmatprep.subr.mxu0 0.0
    %1191 = vmatpush1.msra.mxu0 0.0
    %1192 = vmatprep.subr.mxu0 0.0
    %1193 = vmatpush1.msra.mxu0 0.0
    %1194 = vmatprep.subr.mxu0 0.0
    %1195 = vmatpush1.msra.mxu0 0.0
    %1196 = vmatprep.subr.mxu0 0.0
    %1197 = vmatpush1.msra.mxu0 0.0
    %1198 = vmatprep.subr.mxu0 0.0
    %1199 = vmatpush1.msra.mxu0 0.0
    %1200 = vmatprep.subr.mxu0 0.0
    %1201 = vmatpush1.msra.mxu0 0.0
    %1202 = vmatprep.subr.mxu0 0.0
    %1203 = vmatpush1.msra.mxu0 0.0
    %1204 = vmatprep.subr.mxu0 0.0
    %1205 = vmatpush1.msra.mxu0 0.0
    %1206 = vmatprep.subr.mxu0 0.0
    %1207 = vmatpush1.msra.mxu0 0.0
    %1208 = vmatprep.subr.mxu0 0.0
    %1209 = vmatpush1.msra.mxu0 0.0
    %1210 = vmatprep.subr.mxu0 0.0
    %1211 = vmatpush1.msra.mxu0 0.0
    %1212 = vmatprep.mubr.f32.mxu0 0.0
    %v1213 = vand.u32 %v1047, 4294901760
    %1214 = vmatmul.mubr.f32.gmra.mrb[0].mxu0 %v1213
    %v1215 = vpop.f32.mrb[0].mxu0
    %v1216 = vadd.f32 %v1125, %v1215
    %v1217 = vpop.f32.mrb[0].mxu0
    %1218 = vdwg.mxu0
    %1219 = vmatprep.subr.mxu0 0.0
    %v1220 = vand.u32 %v1033, 4294901760
    %v1221 = vsub.f32 %v1033, %v1220
    %1222 = vmatpush1.msra.mxu0 %v1221
    %1223 = vmatprep.subr.mxu0 0.0
    %v1224 = vand.u32 %v1034, 4294901760
    %v1225 = vsub.f32 %v1034, %v1224
    %1226 = vmatpush1.msra.mxu0 %v1225
    %1227 = vmatprep.subr.mxu0 0.0
    %v1228 = vand.u32 %v1035, 4294901760
    %v1229 = vsub.f32 %v1035, %v1228
    %1230 = vmatpush1.msra.mxu0 %v1229
    %1231 = vmatprep.subr.mxu0 0.0
    %v1232 = vand.u32 %v1036, 4294901760
    %v1233 = vsub.f32 %v1036, %v1232
    %1234 = vmatpush1.msra.mxu0 %v1233
    %1235 = vmatprep.subr.mxu0 0.0
    %1236 = vmatpush1.msra.mxu0 0.0
    %1237 = vmatprep.subr.mxu0 0.0
    %1238 = vmatpush1.msra.mxu0 0.0
    %1239 = vmatprep.subr.mxu0 0.0
    %1240 = vmatpush1.msra.mxu0 0.0
    %1241 = vmatprep.subr.mxu0 0.0
    %1242 = vmatpush1.msra.mxu0 0.0
    %1243 = vmatprep.subr.mxu0 0.0
    %1244 = vmatpush1.msra.mxu0 0.0
    %1245 = vmatprep.subr.mxu0 0.0
    %1246 = vmatpush1.msra.mxu0 0.0
    %1247 = vmatprep.subr.mxu0 0.0
    %1248 = vmatpush1.msra.mxu0 0.0
    %1249 = vmatprep.subr.mxu0 0.0
    %1250 = vmatpush1.msra.mxu0 0.0
    %1251 = vmatprep.subr.mxu0 0.0
    %1252 = vmatpush1.msra.mxu0 0.0
    %1253 = vmatprep.subr.mxu0 0.0
    %1254 = vmatpush1.msra.mxu0 0.0
    %1255 = vmatprep.subr.mxu0 0.0
    %1256 = vmatpush1.msra.mxu0 0.0
    %1257 = vmatprep.subr.mxu0 0.0
    %1258 = vmatpush1.msra.mxu0 0.0
    %1259 = vmatprep.subr.mxu0 0.0
    %1260 = vmatpush1.msra.mxu0 0.0
    %1261 = vmatprep.subr.mxu0 0.0
    %1262 = vmatpush1.msra.mxu0 0.0
    %1263 = vmatprep.subr.mxu0 0.0
    %1264 = vmatpush1.msra.mxu0 0.0
    %1265 = vmatprep.subr.mxu0 0.0
    %1266 = vmatpush1.msra.mxu0 0.0
    %1267 = vmatprep.subr.mxu0 0.0
    %1268 = vmatpush1.msra.mxu0 0.0
    %1269 = vmatprep.subr.mxu0 0.0
    %1270 = vmatpush1.msra.mxu0 0.0
    %1271 = vmatprep.subr.mxu0 0.0
    %1272 = vmatpush1.msra.mxu0 0.0
    %1273 = vmatprep.subr.mxu0 0.0
    %1274 = vmatpush1.msra.mxu0 0.0
    %1275 = vmatprep.subr.mxu0 0.0
    %1276 = vmatpush1.msra.mxu0 0.0
    %1277 = vmatprep.subr.mxu0 0.0
    %1278 = vmatpush1.msra.mxu0 0.0
    %1279 = vmatprep.subr.mxu0 0.0
    %1280 = vmatpush1.msra.mxu0 0.0
    %1281 = vmatprep.subr.mxu0 0.0
    %1282 = vmatpush1.msra.mxu0 0.0
    %1283 = vmatprep.subr.mxu0 0.0
    %1284 = vmatpush1.msra.mxu0 0.0
    %1285 = vmatprep.subr.mxu0 0.0
    %1286 = vmatpush1.msra.mxu0 0.0
    %1287 = vmatprep.subr.mxu0 0.0
    %1288 = vmatpush1.msra.mxu0 0.0
    %1289 = vmatprep.subr.mxu0 0.0
    %1290 = vmatpush1.msra.mxu0 0.0
    %1291 = vmatprep.mubr.f32.mxu0 0.0
    %v1292 = vand.u32 %v1047, 4294901760
    %v1293 = vsub.f32 %v1047, %v1292
    %1294 = vmatmul.mubr.f32.gmra.mrb[0].mxu0 %v1293
    %v1295 = vpop.f32.mrb[0].mxu0
    %v1296 = vadd.f32 %v1216, %v1295
    %v1297 = vpop.f32.mrb[0].mxu0
    %1298 = vdwg.mxu0
    %1299 = vmatprep.subr.mxu0 0.0
    %v1300 = vand.u32 %v1033, 4294901760
    %1301 = vmatpush1.msra.mxu0 %v1300
    %1302 = vmatprep.subr.mxu0 0.0
    %v1303 = vand.u32 %v1034, 4294901760
    %1304 = vmatpush1.msra.mxu0 %v1303
    %1305 = vmatprep.subr.mxu0 0.0
    %v1306 = vand.u32 %v1035, 4294901760
    %1307 = vmatpush1.msra.mxu0 %v1306
    %1308 = vmatprep.subr.mxu0 0.0
    %v1309 = vand.u32 %v1036, 4294901760
    %1310 = vmatpush1.msra.mxu0 %v1309
    %1311 = vmatprep.subr.mxu0 0.0
    %1312 = vmatpush1.msra.mxu0 0.0
    %1313 = vmatprep.subr.mxu0 0.0
    %1314 = vmatpush1.msra.mxu0 0.0
    %1315 = vmatprep.subr.mxu0 0.0
    %1316 = vmatpush1.msra.mxu0 0.0
    %1317 = vmatprep.subr.mxu0 0.0
    %1318 = vmatpush1.msra.mxu0 0.0
    %1319 = vmatprep.subr.mxu0 0.0
    %1320 = vmatpush1.msra.mxu0 0.0
    %1321 = vmatprep.subr.mxu0 0.0
    %1322 = vmatpush1.msra.mxu0 0.0
    %1323 = vmatprep.subr.mxu0 0.0
    %1324 = vmatpush1.msra.mxu0 0.0
    %1325 = vmatprep.subr.mxu0 0.0
    %1326 = vmatpush1.msra.mxu0 0.0
    %1327 = vmatprep.subr.mxu0 0.0
    %1328 = vmatpush1.msra.mxu0 0.0
    %1329 = vmatprep.subr.mxu0 0.0
    %1330 = vmatpush1.msra.mxu0 0.0
    %1331 = vmatprep.subr.mxu0 0.0
    %1332 = vmatpush1.msra.mxu0 0.0
    %1333 = vmatprep.subr.mxu0 0.0
    %1334 = vmatpush1.msra.mxu0 0.0
    %1335 = vmatprep.subr.mxu0 0.0
    %1336 = vmatpush1.msra.mxu0 0.0
    %1337 = vmatprep.subr.mxu0 0.0
    %1338 = vmatpush1.msra.mxu0 0.0
    %1339 = vmatprep.subr.mxu0 0.0
    %1340 = vmatpush1.msra.mxu0 0.0
    %1341 = vmatprep.subr.mxu0 0.0
    %1342 = vmatpush1.msra.mxu0 0.0
    %1343 = vmatprep.subr.mxu0 0.0
    %1344 = vmatpush1.msra.mxu0 0.0
    %1345 = vmatprep.subr.mxu0 0.0
    %1346 = vmatpush1.msra.mxu0 0.0
    %1347 = vmatprep.subr.mxu0 0.0
    %1348 = vmatpush1.msra.mxu0 0.0
    %1349 = vmatprep.subr.mxu0 0.0
    %1350 = vmatpush1.msra.mxu0 0.0
    %1351 = vmatprep.subr.mxu0 0.0
    %1352 = vmatpush1.msra.mxu0 0.0
    %1353 = vmatprep.subr.mxu0 0.0
    %1354 = vmatpush1.msra.mxu0 0.0
    %1355 = vmatprep.subr.mxu0 0.0
    %1356 = vmatpush1.msra.mxu0 0.0
    %1357 = vmatprep.subr.mxu0 0.0
    %1358 = vmatpush1.msra.mxu0 0.0
    %1359 = vmatprep.subr.mxu0 0.0
    %1360 = vmatpush1.msra.mxu0 0.0
    %1361 = vmatprep.subr.mxu0 0.0
    %1362 = vmatpush1.msra.mxu0 0.0
    %1363 = vmatprep.subr.mxu0 0.0
    %1364 = vmatpush1.msra.mxu0 0.0
    %1365 = vmatprep.subr.mxu0 0.0
    %1366 = vmatpush1.msra.mxu0 0.0
    %1367 = vmatprep.mubr.f32.mxu0 0.0
    %v1368 = vand.u32 %v1047, 4294901760
    %v1369 = vsub.f32 %v1047, %v1368
    %v1370 = vand.u32 %v1369, 4294901760
    %1371 = vmatmul.mubr.f32.gmra.mrb[0].mxu0 %v1370
    %v1372 = vpop.f32.mrb[0].mxu0
    %v1373 = vadd.f32 %v1296, %v1372
    %v1374 = vpop.f32.mrb[0].mxu0
    %1375 = vdwg.mxu0
    %1376 = vmatprep.subr.mxu0 0.0
    %v1377 = vand.u32 %v1033, 4294901760
    %v1378 = vsub.f32 %v1033, %v1377
    %v1379 = vand.u32 %v1378, 4294901760
    %1380 = vmatpush1.msra.mxu0 %v1379
    %1381 = vmatprep.subr.mxu0 0.0
    %v1382 = vand.u32 %v1034, 4294901760
    %v1383 = vsub.f32 %v1034, %v1382
    %v1384 = vand.u32 %v1383, 4294901760
    %1385 = vmatpush1.msra.mxu0 %v1384
    %1386 = vmatprep.subr.mxu0 0.0
    %v1387 = vand.u32 %v1035, 4294901760
    %v1388 = vsub.f32 %v1035, %v1387
    %v1389 = vand.u32 %v1388, 4294901760
    %1390 = vmatpush1.msra.mxu0 %v1389
    %1391 = vmatprep.subr.mxu0 0.0
    %v1392 = vand.u32 %v1036, 4294901760
    %v1393 = vsub.f32 %v1036, %v1392
    %v1394 = vand.u32 %v1393, 4294901760
    %1395 = vmatpush1.msra.mxu0 %v1394
    %1396 = vmatprep.subr.mxu0 0.0
    %1397 = vmatpush1.msra.mxu0 0.0
    %1398 = vmatprep.subr.mxu0 0.0
    %1399 = vmatpush1.msra.mxu0 0.0
    %1400 = vmatprep.subr.mxu0 0.0
    %1401 = vmatpush1.msra.mxu0 0.0
    %1402 = vmatprep.subr.mxu0 0.0
    %1403 = vmatpush1.msra.mxu0 0.0
    %1404 = vmatprep.subr.mxu0 0.0
    %1405 = vmatpush1.msra.mxu0 0.0
    %1406 = vmatprep.subr.mxu0 0.0
    %1407 = vmatpush1.msra.mxu0 0.0
    %1408 = vmatprep.subr.mxu0 0.0
    %1409 = vmatpush1.msra.mxu0 0.0
    %1410 = vmatprep.subr.mxu0 0.0
    %1411 = vmatpush1.msra.mxu0 0.0
    %1412 = vmatprep.subr.mxu0 0.0
    %1413 = vmatpush1.msra.mxu0 0.0
    %1414 = vmatprep.subr.mxu0 0.0
    %1415 = vmatpush1.msra.mxu0 0.0
    %1416 = vmatprep.subr.mxu0 0.0
    %1417 = vmatpush1.msra.mxu0 0.0
    %1418 = vmatprep.subr.mxu0 0.0
    %1419 = vmatpush1.msra.mxu0 0.0
    %1420 = vmatprep.subr.mxu0 0.0
    %1421 = vmatpush1.msra.mxu0 0.0
    %1422 = vmatprep.subr.mxu0 0.0
    %1423 = vmatpush1.msra.mxu0 0.0
    %1424 = vmatprep.subr.mxu0 0.0
    %1425 = vmatpush1.msra.mxu0 0.0
    %1426 = vmatprep.subr.mxu0 0.0
    %1427 = vmatpush1.msra.mxu0 0.0
    %1428 = vmatprep.subr.mxu0 0.0
    %1429 = vmatpush1.msra.mxu0 0.0
    %1430 = vmatprep.subr.mxu0 0.0
    %1431 = vmatpush1.msra.mxu0 0.0
    %1432 = vmatprep.subr.mxu0 0.0
    %1433 = vmatpush1.msra.mxu0 0.0
    %1434 = vmatprep.subr.mxu0 0.0
    %1435 = vmatpush1.msra.mxu0 0.0
    %1436 = vmatprep.subr.mxu0 0.0
    %1437 = vmatpush1.msra.mxu0 0.0
    %1438 = vmatprep.subr.mxu0 0.0
    %1439 = vmatpush1.msra.mxu0 0.0
    %1440 = vmatprep.subr.mxu0 0.0
    %1441 = vmatpush1.msra.mxu0 0.0
    %1442 = vmatprep.subr.mxu0 0.0
    %1443 = vmatpush1.msra.mxu0 0.0
    %1444 = vmatprep.subr.mxu0 0.0
    %1445 = vmatpush1.msra.mxu0 0.0
    %1446 = vmatprep.subr.mxu0 0.0
    %1447 = vmatpush1.msra.mxu0 0.0
    %1448 = vmatprep.subr.mxu0 0.0
    %1449 = vmatpush1.msra.mxu0 0.0
    %1450 = vmatprep.subr.mxu0 0.0
    %1451 = vmatpush1.msra.mxu0 0.0
    %1452 = vmatprep.mubr.f32.mxu0 0.0
    %v1453 = vand.u32 %v1047, 4294901760
    %1454 = vmatmul.mubr.f32.gmra.mrb[0].mxu0 %v1453
    %v1455 = vpop.f32.mrb[0].mxu0
    %v1456 = vadd.f32 %v1373, %v1455
    %v1457 = vpop.f32.mrb[0].mxu0
    %1458 = vdwg.mxu0
    %1459 = vmatprep.subr.mxu0 0.0
    %v1460 = vand.u32 %v1033, 4294901760
    %1461 = vmatpush1.msra.mxu0 %v1460
    %1462 = vmatprep.subr.mxu0 0.0
    %v1463 = vand.u32 %v1034, 4294901760
    %1464 = vmatpush1.msra.mxu0 %v1463
    %1465 = vmatprep.subr.mxu0 0.0
    %v1466 = vand.u32 %v1035, 4294901760
    %1467 = vmatpush1.msra.mxu0 %v1466
    %1468 = vmatprep.subr.mxu0 0.0
    %v1469 = vand.u32 %v1036, 4294901760
    %1470 = vmatpush1.msra.mxu0 %v1469
    %1471 = vmatprep.subr.mxu0 0.0
    %1472 = vmatpush1.msra.mxu0 0.0
    %1473 = vmatprep.subr.mxu0 0.0
    %1474 = vmatpush1.msra.mxu0 0.0
    %1475 = vmatprep.subr.mxu0 0.0
    %1476 = vmatpush1.msra.mxu0 0.0
    %1477 = vmatprep.subr.mxu0 0.0
    %1478 = vmatpush1.msra.mxu0 0.0
    %1479 = vmatprep.subr.mxu0 0.0
    %1480 = vmatpush1.msra.mxu0 0.0
    %1481 = vmatprep.subr.mxu0 0.0
    %1482 = vmatpush1.msra.mxu0 0.0
    %1483 = vmatprep.subr.mxu0 0.0
    %1484 = vmatpush1.msra.mxu0 0.0
    %1485 = vmatprep.subr.mxu0 0.0
    %1486 = vmatpush1.msra.mxu0 0.0
    %1487 = vmatprep.subr.mxu0 0.0
    %1488 = vmatpush1.msra.mxu0 0.0
    %1489 = vmatprep.subr.mxu0 0.0
    %1490 = vmatpush1.msra.mxu0 0.0
    %1491 = vmatprep.subr.mxu0 0.0
    %1492 = vmatpush1.msra.mxu0 0.0
    %1493 = vmatprep.subr.mxu0 0.0
    %1494 = vmatpush1.msra.mxu0 0.0
    %1495 = vmatprep.subr.mxu0 0.0
    %1496 = vmatpush1.msra.mxu0 0.0
    %1497 = vmatprep.subr.mxu0 0.0
    %1498 = vmatpush1.msra.mxu0 0.0
    %1499 = vmatprep.subr.mxu0 0.0
    %1500 = vmatpush1.msra.mxu0 0.0
    %1501 = vmatprep.subr.mxu0 0.0
    %1502 = vmatpush1.msra.mxu0 0.0
    %1503 = vmatprep.subr.mxu0 0.0
    %1504 = vmatpush1.msra.mxu0 0.0
    %1505 = vmatprep.subr.mxu0 0.0
    %1506 = vmatpush1.msra.mxu0 0.0
    %1507 = vmatprep.subr.mxu0 0.0
    %1508 = vmatpush1.msra.mxu0 0.0
    %1509 = vmatprep.subr.mxu0 0.0
    %1510 = vmatpush1.msra.mxu0 0.0
    %1511 = vmatprep.subr.mxu0 0.0
    %1512 = vmatpush1.msra.mxu0 0.0
    %1513 = vmatprep.subr.mxu0 0.0
    %1514 = vmatpush1.msra.mxu0 0.0
    %1515 = vmatprep.subr.mxu0 0.0
    %1516 = vmatpush1.msra.mxu0 0.0
    %1517 = vmatprep.subr.mxu0 0.0
    %1518 = vmatpush1.msra.mxu0 0.0
    %1519 = vmatprep.subr.mxu0 0.0
    %1520 = vmatpush1.msra.mxu0 0.0
    %1521 = vmatprep.subr.mxu0 0.0
    %1522 = vmatpush1.msra.mxu0 0.0
    %1523 = vmatprep.subr.mxu0 0.0
    %1524 = vmatpush1.msra.mxu0 0.0
    %1525 = vmatprep.subr.mxu0 0.0
    %1526 = vmatpush1.msra.mxu0 0.0
    %1527 = vmatprep.mubr.f32.mxu0 0.0
    %v1528 = vand.u32 %v1047, 4294901760
    %1529 = vmatmul.mubr.f32.gmra.mrb[0].mxu0 %v1528
    %v1530 = vpop.f32.mrb[0].mxu0
    %v1531 = vadd.f32 %v1456, %v1530
    %v1532 = vpop.f32.mrb[0].mxu0
    %1533 = vdwg.mxu0
    %v1534 = vtanh.pop %v1531
    %1535 = vst [vmem:[%s8] sm:$0xff] %v1534
    // Predicated region
    $region38: #{_single_step_call.1} parent=1 // pred_check
      _
    $region39: #{_single_step_call.1} parent=1 // pred_check_branch
      %1537 = sbr.rel (0) target = $region41
    $region40: #{_single_step_call.1} parent=1 // pred_region
      _
    $region41: #{_single_step_call.1} parent=1 // pred_fallthru
      _
    // Predicated region
    $region42: #{_single_step_call.1} parent=1 // pred_check
      _
    $region43: #{_single_step_call.1} parent=1 // pred_check_branch
      %1539 = sbr.rel (0) target = $region45
    $region44: #{_single_step_call.1} parent=1 // pred_region
      _
    $region45: #{_single_step_call.1} parent=1 // pred_fallthru
      _
    %1540 = vsyncpa [#allocation3], 1

</llo_original>
